<compile_context>
chip_gen: v7x
topology: tpu7x:2x2x1
jax: 0.10.0
libtpu: 0.0.40
codegen_flags: <defaults>
</compile_context>

<pallas_src>
import functools
import math

import jax
import jax.numpy as jnp
from jax import lax
from jax.experimental import pallas as pl
from jax.experimental.pallas import tpu as pltpu

EPS = 1e-6
MASK_PENALTY = 1e9          # torch: scores.masked_fill(mask == 0, -1e9)
_MB = 1 << 20


# ----------------------- feature probe: single buffering ----------------------- #

_single_buffer_ok = None


def _probe_single_buffering():
    """Probe pl.Buffered(1) once, eagerly (outside any jit trace), so an older jax
    simply falls back to default double-buffering instead of failing to compile."""
    global _single_buffer_ok
    if _single_buffer_ok is not None:
        return _single_buffer_ok

    def _probe(x_ref, o_ref):
        o_ref[...] = x_ref[...] + 1.0

    try:
        out = pl.pallas_call(
            _probe,
            out_shape=jax.ShapeDtypeStruct((8, 128), jnp.float32),
            grid=(1,),
            in_specs=[pl.BlockSpec((8, 128), lambda i: (0, 0),
                                   pipeline_mode=pl.Buffered(1))],
            out_specs=pl.BlockSpec((8, 128), lambda i: (0, 0)),
        )(jnp.zeros((8, 128), jnp.float32))
        jax.block_until_ready(out)
        _single_buffer_ok = True
    except Exception:
        _single_buffer_ok = False
    return _single_buffer_ok


# Run the probe at import time (outside any trace) so lowering errors are caught here.
_probe_single_buffering()


def _const_spec(block_shape, grid_rank):
    """BlockSpec for a grid-constant (resident) operand: index map always (0, 0) and,
    when supported, a single VMEM buffer instead of the default double buffer."""
    zeros = (0,) * len(block_shape)
    imap = {1: (lambda i: zeros), 2: (lambda i, j: zeros)}[grid_rank]
    if _probe_single_buffering():
        return pl.BlockSpec(block_shape, imap, pipeline_mode=pl.Buffered(1))
    return pl.BlockSpec(block_shape, imap)


# ------------------------------ tiling helpers --------------------------------- #

def _largest_divisor_tile(total, cap):
    """Largest t dividing `total` with t % 8 == 0 (or t == total), t <= cap."""
    cap = max(1, min(cap, total))
    for t in range(cap, 0, -1):
        if total % t == 0 and (t % 8 == 0 or t == total):
            return t
    return total


def _row_tile(m, bytes_per_row, budget_bytes=8 * _MB):
    """VMEM- and grid-aware row tile: fits `budget_bytes` of per-row state and keeps
    at least 2 (or 4) grid steps so pipelining / v7x megacore sharding engage."""
    cap = max(8, budget_bytes // max(bytes_per_row, 1))
    if m >= 64:
        cap = min(cap, m // 4)
    elif m >= 16:
        cap = min(cap, m // 2)
    cap = min(cap, 1024)
    return _largest_divisor_tile(m, cap)


def _q_tile(s, bytes_per_row, budget_bytes=4 * _MB):
    cap = max(8, min(budget_bytes // max(bytes_per_row, 1), 256))
    if s >= 32:
        cap = min(cap, s // 2)
    return _largest_divisor_tile(s, cap)


def _ff_tile(dff, cap=2048):
    """d_ff tile: lane dim of the w1 block -> must be a multiple of 128 or == d_ff."""
    cap = max(1, min(cap, dff))
    for t in range(cap, 0, -1):
        if dff % t == 0 and (t % 128 == 0 or t == dff):
            return t
    return dff


def _vmem_limit(needed_bytes):
    """Explicit scoped-VMEM limit: 2x the computed tile+weight footprint with a 32 MiB
    floor, capped below physical VMEM (the tilings keep `needed` small anyway)."""
    return int(min(max(2 * needed_bytes, 32 * _MB), 112 * _MB))


# ----------------------------- in-kernel helpers ------------------------------- #

def _layernorm(x, g, b):
    """Annotated-Transformer LayerNorm: a_2*(x-mean)/(std_unbiased+eps)+b_2.

    Two-pass (mean, centered variance) in fp32 for robustness; unbiased std (d-1)
    and eps added to std, matching the torch reference."""
    d = x.shape[-1]
    mean = jnp.mean(x, axis=-1, keepdims=True)
    xc = x - mean
    var_unbiased = jnp.sum(xc * xc, axis=-1, keepdims=True) * (1.0 / (d - 1))
    std = jnp.sqrt(var_unbiased)
    return g * xc / (std + EPS) + b


# ------------------------------- Pallas kernels -------------------------------- #

def ln_qkv_kernel(x_ref, g_ref, b_ref, w_ref, bias_ref, o_ref):
    """qkv = LayerNorm(x) @ W_qkv + b_qkv   (W_qkv = [Wq|Wk|Wv], bf16 MXU, f32 acc)."""
    x = x_ref[...].astype(jnp.float32)
    xn = _layernorm(x, g_ref[...], b_ref[...])
    y = jnp.dot(xn.astype(jnp.bfloat16), w_ref[...],
                preferred_element_type=jnp.float32) + bias_ref[...]
    o_ref[...] = y.astype(o_ref.dtype)


def attn_wo_residual_kernel(qkv_ref, m_ref, wo_ref, bo_ref, x_ref, o_ref, attn_ref,
                            *, num_heads, d_k, q_tile):
    """One (batch, query-tile) per grid step:
       out = x + Wo( concat_h softmax(Q_h K_h^T / sqrt(dk) + mask_bias) V_h ) + bo.

    qkv_ref: (S, 3D) bf16 fused projection slab (resident across query tiles).
    m_ref:   (1, S) key padding mask (hoisted to one additive bias).
    attn_ref: (TQ, D) bf16 VMEM scratch; heads are stored directly into lane slices.
    """
    D = num_heads * d_k
    inv_sqrt_dk = 1.0 / math.sqrt(d_k)

    q_start = pl.multiple_of(pl.program_id(1) * q_tile, q_tile)
    q_rows = qkv_ref[pl.ds(q_start, q_tile), :]                      # (TQ, 3D) bf16
    bias = (m_ref[...].astype(jnp.float32) - 1.0) * MASK_PENALTY     # (1, S) additive

    for h in range(num_heads):                                       # static unroll
        q = q_rows[:, h * d_k:(h + 1) * d_k]
        k = qkv_ref[:, D + h * d_k:D + (h + 1) * d_k]
        v = qkv_ref[:, 2 * D + h * d_k:2 * D + (h + 1) * d_k]
        # scores: contract last dims directly (no k.T / XLU transpose)
        s = lax.dot_general(q, k, dimension_numbers=(((1,), (1,)), ((), ())),
                            preferred_element_type=jnp.float32)      # (TQ, S)
        s = s * inv_sqrt_dk + bias
        s = s - jnp.max(s, axis=-1, keepdims=True)
        p = jnp.exp(s)
        p = p / jnp.sum(p, axis=-1, keepdims=True)                   # exact divide
        pv = jnp.dot(p.astype(jnp.bfloat16), v,
                     preferred_element_type=jnp.float32)             # (TQ, d_k)
        attn_ref[:, h * d_k:(h + 1) * d_k] = pv.astype(attn_ref.dtype)

    y = jnp.dot(attn_ref[...], wo_ref[...],
                preferred_element_type=jnp.float32) + bo_ref[...]
    o_ref[...] = (x_ref[...].astype(jnp.float32) + y).astype(o_ref.dtype)


def ln_ffn_residual_kernel(x_ref, g_ref, b_ref, w1_ref, b1_ref, w2_ref, b2_ref,
                           o_ref, xn_ref, acc_ref):
    """out = x + ( relu(LayerNorm(x) @ W1 + b1) @ W2 + b2 ), tiled over d_ff.

    Grid axis 1 walks d_ff tiles ("arbitrary"); LayerNorm(x) is cached in a bf16
    scratch at f==0 and the W2 product accumulates in an fp32 scratch."""
    f = pl.program_id(1)

    @pl.when(f == 0)
    def _():
        x = x_ref[...].astype(jnp.float32)
        xn_ref[...] = _layernorm(x, g_ref[...], b_ref[...]).astype(xn_ref.dtype)
        acc_ref[...] = jnp.zeros_like(acc_ref)

    h = jnp.dot(xn_ref[...], w1_ref[...],
                preferred_element_type=jnp.float32) + b1_ref[...]
    h = jnp.maximum(h, 0.0)
    acc_ref[...] += jnp.dot(h.astype(jnp.bfloat16), w2_ref[...],
                            preferred_element_type=jnp.float32)

    @pl.when(f == pl.num_programs(1) - 1)
    def _():
        y = acc_ref[...] + b2_ref[...]
        o_ref[...] = (x_ref[...].astype(jnp.float32) + y).astype(o_ref.dtype)


def layernorm_kernel(x_ref, g_ref, b_ref, o_ref):
    x = x_ref[...].astype(jnp.float32)
    o_ref[...] = _layernorm(x, g_ref[...], b_ref[...]).astype(o_ref.dtype)


# ------------------------------ Pallas wrappers -------------------------------- #

def pallas_ln_qkv(x2d, g, b, w, bias):
    M, D = x2d.shape
    Dout = w.shape[1]
    bytes_per_row = 2 * 4 * D + 2 * 2 * Dout + 4 * Dout
    TM = _row_tile(M, bytes_per_row)
    needed = 2 * D * Dout + 4 * Dout + 8 * D + TM * bytes_per_row
    return pl.pallas_call(
        ln_qkv_kernel,
        out_shape=jax.ShapeDtypeStruct((M, Dout), jnp.bfloat16),
        grid=(M // TM,),
        in_specs=[
            pl.BlockSpec((TM, D), lambda i: (i, 0)),
            _const_spec((1, D), 1),
            _const_spec((1, D), 1),
            _const_spec((D, Dout), 1),
            _const_spec((1, Dout), 1),
        ],
        out_specs=pl.BlockSpec((TM, Dout), lambda i: (i, 0)),
        compiler_params=pltpu.CompilerParams(
            dimension_semantics=("parallel",),
            vmem_limit_bytes=_vmem_limit(needed)),
    )(x2d, g.reshape(1, D), b.reshape(1, D), w, bias.reshape(1, Dout))


def pallas_attention_out_residual(qkv, mask, wo, bo, xres, num_heads):
    B, S, threeD = qkv.shape
    D = threeD // 3
    d_k = D // num_heads
    bytes_per_qrow = 8 * S + 2 * threeD + 16 * D + 2 * D
    TQ = _q_tile(S, bytes_per_qrow)
    needed = (2 * 2 * S * threeD          # bf16 QKV slab, double buffered
              + 2 * 4 * S                 # mask
              + 2 * D * D + 4 * D         # Wo (bf16, single buffer) + bias
              + TQ * bytes_per_qrow)
    kernel = functools.partial(attn_wo_residual_kernel,
                               num_heads=num_heads, d_k=d_k, q_tile=TQ)
    return pl.pallas_call(
        kernel,
        out_shape=jax.ShapeDtypeStruct((B, S, D), xres.dtype),
        grid=(B, S // TQ),
        in_specs=[
            pl.BlockSpec((None, S, threeD), lambda b, q: (b, 0, 0)),
            pl.BlockSpec((None, 1, S), lambda b, q: (b, 0, 0)),
            _const_spec((D, D), 2),
            _const_spec((1, D), 2),
            pl.BlockSpec((None, TQ, D), lambda b, q: (b, q, 0)),
        ],
        out_specs=pl.BlockSpec((None, TQ, D), lambda b, q: (b, q, 0)),
        scratch_shapes=[pltpu.VMEM((TQ, D), jnp.bfloat16)],
        input_output_aliases={4: 0},      # residual stream aliased to the output
        compiler_params=pltpu.CompilerParams(
            dimension_semantics=("parallel", "parallel"),
            vmem_limit_bytes=_vmem_limit(needed)),
    )(qkv, mask, wo, bo.reshape(1, D), xres)


def pallas_ln_ffn_residual(x2d, g, b, w1, b1, w2, b2):
    M, D = x2d.shape
    DFF = w1.shape[1]
    TF = _ff_tile(DFF)
    bytes_per_row = 8 * D + 8 * D + 2 * D + 4 * D + 6 * TF
    TM = _row_tile(M, bytes_per_row)
    needed = (8 * D + 4 * D               # LN params + b2
              + 2 * 2 * 2 * D * TF        # w1/w2 tiles (bf16, double buffered)
              + 2 * 4 * TF                # b1 tile
              + TM * bytes_per_row)
    return pl.pallas_call(
        ln_ffn_residual_kernel,
        out_shape=jax.ShapeDtypeStruct((M, D), x2d.dtype),
        grid=(M // TM, DFF // TF),
        in_specs=[
            pl.BlockSpec((TM, D), lambda i, f: (i, 0)),
            _const_spec((1, D), 2),
            _const_spec((1, D), 2),
            pl.BlockSpec((D, TF), lambda i, f: (0, f)),
            pl.BlockSpec((1, TF), lambda i, f: (0, f)),
            pl.BlockSpec((TF, D), lambda i, f: (f, 0)),
            _const_spec((1, D), 2),
        ],
        out_specs=pl.BlockSpec((TM, D), lambda i, f: (i, 0)),
        scratch_shapes=[pltpu.VMEM((TM, D), jnp.bfloat16),   # cached LayerNorm(x)
                        pltpu.VMEM((TM, D), jnp.float32)],   # fp32 accumulator
        input_output_aliases={0: 0},      # residual stream aliased to the output
        compiler_params=pltpu.CompilerParams(
            dimension_semantics=("parallel", "arbitrary"),
            vmem_limit_bytes=_vmem_limit(needed)),
    )(x2d, g.reshape(1, D), b.reshape(1, D), w1, b1.reshape(1, DFF), w2,
      b2.reshape(1, D))


def pallas_layernorm(x2d, g, b):
    M, D = x2d.shape
    bytes_per_row = 16 * D
    TM = _row_tile(M, bytes_per_row)
    needed = 8 * D + TM * bytes_per_row
    return pl.pallas_call(
        layernorm_kernel,
        out_shape=jax.ShapeDtypeStruct((M, D), x2d.dtype),
        grid=(M // TM,),
        in_specs=[
            pl.BlockSpec((TM, D), lambda i: (i, 0)),
            _const_spec((1, D), 1),
            _const_spec((1, D), 1),
        ],
        out_specs=pl.BlockSpec((TM, D), lambda i: (i, 0)),
        compiler_params=pltpu.CompilerParams(
            dimension_semantics=("parallel",),
            vmem_limit_bytes=_vmem_limit(needed)),
    )(x2d, g.reshape(1, D), b.reshape(1, D))


# ------------------------------ Encoder forward --------------------------------- #

def encoder_forward(x, mask, params, num_heads):
    B, S, D = x.shape
    x2d = x.reshape(B * S, D)
    for lp in params["layers"]:
        # sublayer 0: x + Wo( attn( LN(x) @ W_qkv ) )          (dropout = identity, eval)
        qkv = pallas_ln_qkv(x2d, lp["ln1_g"], lp["ln1_b"], lp["wqkv"], lp["bqkv"])
        x3d = pallas_attention_out_residual(
            qkv.reshape(B, S, 3 * D), mask, lp["wo"], lp["bo"],
            x2d.reshape(B, S, D), num_heads)
        x2d = x3d.reshape(B * S, D)
        # sublayer 1: x + W2( relu( LN(x) @ W1 + b1 ) ) + b2
        x2d = pallas_ln_ffn_residual(x2d, lp["ln2_g"], lp["ln2_b"],
                                     lp["w1"], lp["b1"], lp["w2"], lp["b2"])
    # final Encoder LayerNorm
    return pallas_layernorm(x2d, params["norm_g"], params["norm_b"]).reshape(B, S, D)


# ------------------------------ Parameter init ---------------------------------- #

def init_params(key, n_layers, d_model, d_ff):
    def lin(k, din, dout):
        kw, kb = jax.random.split(k)
        w = jax.random.normal(kw, (din, dout), jnp.float32) * 0.02
        b = jax.random.normal(kb, (dout,), jnp.float32) * 0.02
        return w, b

    layers = []
    for _ in range(n_layers):
        key, *ks = jax.random.split(key, 7)
        wq, bq = lin(ks[0], d_model, d_model)
        wk, bk = lin(ks[1], d_model, d_model)
        wv, bv = lin(ks[2], d_model, d_model)
        wo, bo = lin(ks[3], d_model, d_model)
        w1, b1 = lin(ks[4], d_model, d_ff)
        w2, b2 = lin(ks[5], d_ff, d_model)
        layers.append(dict(
            # fused QKV projection, column layout [Q | K | V]; weights in bf16 for the MXU
            wqkv=jnp.concatenate([wq, wk, wv], axis=1).astype(jnp.bfloat16),
            bqkv=jnp.concatenate([bq, bk, bv], axis=0),
            wo=wo.astype(jnp.bfloat16), bo=bo,
            w1=w1.astype(jnp.bfloat16), b1=b1,
            w2=w2.astype(jnp.bfloat16), b2=b2,
            ln1_g=jnp.ones((d_model,), jnp.float32),
            ln1_b=jnp.zeros((d_model,), jnp.float32),
            ln2_g=jnp.ones((d_model,), jnp.float32),
            ln2_b=jnp.zeros((d_model,), jnp.float32),
        ))
    return dict(
        layers=layers,
        norm_g=jnp.ones((d_model,), jnp.float32),
        norm_b=jnp.zeros((d_model,), jnp.float32),
    )


# ------------------------------------ main --------------------------------------- #

if __name__ == "__main__":
    B, S, D, H, DFF, NLAYERS = 2, 8, 32, 4, 64, 2

    key = jax.random.PRNGKey(0)
    kx, kp = jax.random.split(key)
    x = jax.random.normal(kx, (B, S, D), jnp.float32)
    # src padding mask (B, 1, S): batch 1 has last two positions padded out.
    mask = jnp.ones((B, 1, S), jnp.float32).at[1, 0, 6:].set(0.0)

    params = init_params(kp, NLAYERS, D, DFF)

    fwd = jax.jit(functools.partial(encoder_forward, num_heads=H))
    out = fwd(x, mask, params)
    out = jax.block_until_ready(out)

    assert out.shape == (B, S, D) and out.dtype == jnp.float32
    assert bool(jnp.all(jnp.isfinite(out)))
    print("KERNEL_OK")
</pallas_src>

<mosaic_0001>
module attributes {stable_mosaic.version = 11 : i64} {
  func.func @_probe(%arg0: i32, %arg1: memref<8x128xf32, #tpu.memory_space<vmem>>, %arg2: memref<8x128xf32, #tpu.memory_space<vmem>>) attributes {dimension_semantics = [#tpu.dimension_semantics<arbitrary>], iteration_bounds = array<i64: 1>, scalar_prefetch = 0 : i64, scratch_operands = 0 : i64, tpu.core_type = #tpu.core_type<tc>, window_params = [{pipeline_mode = #tpu.pipeline_mode<synchronous>, transform_indices = @transform_0, window_bounds = array<i64: 8, 128>}, {pipeline_mode = #tpu.pipeline_mode<synchronous>, transform_indices = @transform_1, window_bounds = array<i64: 8, 128>}]} {
    %c0 = arith.constant 0 : index
    %c0_0 = arith.constant 0 : index
    %0 = vector.load %arg1[%c0, %c0_0] : memref<8x128xf32, #tpu.memory_space<vmem>>, vector<8x128xf32>
    %cst = arith.constant 1.000000e+00 : f32
    %1 = vector.broadcast %cst : f32 to vector<8x128xf32>
    %2 = arith.addf %0, %1 : vector<8x128xf32>
    %c0_1 = arith.constant 0 : index
    %c0_2 = arith.constant 0 : index
    %3 = vector.load %arg2[%c0_1, %c0_2] : memref<8x128xf32, #tpu.memory_space<vmem>>, vector<8x128xf32>
    tpu.vector_store %arg2[%c0_1, %c0_2], %2 {strides = array<i32>} : memref<8x128xf32, #tpu.memory_space<vmem>>, vector<8x128xf32>,
    return
  }
  func.func @transform_0(%arg0: i32) -> (i32, i32) {
    %c0_i32 = arith.constant 0 : i32
    %c0_i32_0 = arith.constant 0 : i32
    %c0_i32_1 = arith.constant 0 : i32
    return %c0_i32, %c0_i32_0 : i32, i32
  }
  func.func @transform_1(%arg0: i32) -> (i32, i32) {
    %c0_i32 = arith.constant 0 : i32
    %c0_i32_0 = arith.constant 0 : i32
    %c0_i32_1 = arith.constant 0 : i32
    return %c0_i32, %c0_i32_0 : i32, i32
  }
}

module attributes {stable_mosaic.version = 11 : i64} {
  func.func @layernorm_kernel(%arg0: i32, %arg1: memref<8x32xf32, #tpu.memory_space<vmem>>, %arg2: memref<1x32xf32, #tpu.memory_space<vmem>>, %arg3: memref<1x32xf32, #tpu.memory_space<vmem>>, %arg4: memref<8x32xf32, #tpu.memory_space<vmem>>) attributes {dimension_semantics = [#tpu.dimension_semantics<parallel>], iteration_bounds = array<i64: 2>, scalar_prefetch = 0 : i64, scratch_operands = 0 : i64, tpu.core_type = #tpu.core_type<tc>, window_params = [{transform_indices = @transform_0, window_bounds = array<i64: 8, 32>}, {pipeline_mode = #tpu.pipeline_mode<synchronous>, transform_indices = @transform_1, window_bounds = array<i64: 1, 32>}, {pipeline_mode = #tpu.pipeline_mode<synchronous>, transform_indices = @transform_2, window_bounds = array<i64: 1, 32>}, {transform_indices = @transform_3, window_bounds = array<i64: 8, 32>}]} {
    %c0 = arith.constant 0 : index
    %c0_0 = arith.constant 0 : index
    %0 = vector.load %arg1[%c0, %c0_0] : memref<8x32xf32, #tpu.memory_space<vmem>>, vector<8x32xf32>
    %c0_1 = arith.constant 0 : index
    %c0_2 = arith.constant 0 : index
    %1 = vector.load %arg2[%c0_1, %c0_2] : memref<1x32xf32, #tpu.memory_space<vmem>>, vector<1x32xf32>
    %c0_3 = arith.constant 0 : index
    %c0_4 = arith.constant 0 : index
    %2 = vector.load %arg3[%c0_3, %c0_4] : memref<1x32xf32, #tpu.memory_space<vmem>>, vector<1x32xf32>
    %cst = arith.constant dense<0.000000e+00> : vector<8xf32>
    %3 = vector.multi_reduction <add>, %0, %cst [1] : vector<8x32xf32> to vector<8xf32>
    %4 = vector.shape_cast %3 : vector<8xf32> to vector<8x1xf32>
    %cst_5 = arith.constant 3.200000e+01 : f32
    %5 = vector.broadcast %cst_5 : f32 to vector<8x1xf32>
    %6 = arith.divf %4, %5 : vector<8x1xf32>
    %7 = vector.broadcast %6 : vector<8x1xf32> to vector<8x32xf32>
    %8 = arith.subf %0, %7 : vector<8x32xf32>
    %9 = arith.mulf %8, %8 : vector<8x32xf32>
    %cst_6 = arith.constant dense<0.000000e+00> : vector<8xf32>
    %10 = vector.multi_reduction <add>, %9, %cst_6 [1] : vector<8x32xf32> to vector<8xf32>
    %11 = vector.shape_cast %10 : vector<8xf32> to vector<8x1xf32>
    %cst_7 = arith.constant 0.0322580636 : f32
    %12 = vector.broadcast %cst_7 : f32 to vector<8x1xf32>
    %13 = arith.mulf %11, %12 : vector<8x1xf32>
    %14 = math.sqrt %13 : vector<8x1xf32>
    %15 = vector.broadcast %1 : vector<1x32xf32> to vector<8x32xf32>
    %16 = arith.mulf %15, %8 : vector<8x32xf32>
    %cst_8 = arith.constant 9.99999997E-7 : f32
    %17 = vector.broadcast %cst_8 : f32 to vector<8x1xf32>
    %18 = arith.addf %14, %17 : vector<8x1xf32>
    %19 = vector.broadcast %18 : vector<8x1xf32> to vector<8x32xf32>
    %20 = arith.divf %16, %19 : vector<8x32xf32>
    %21 = vector.broadcast %2 : vector<1x32xf32> to vector<8x32xf32>
    %22 = arith.addf %20, %21 : vector<8x32xf32>
    %c0_9 = arith.constant 0 : index
    %c0_10 = arith.constant 0 : index
    %23 = vector.load %arg4[%c0_9, %c0_10] : memref<8x32xf32, #tpu.memory_space<vmem>>, vector<8x32xf32>
    tpu.vector_store %arg4[%c0_9, %c0_10], %22 {strides = array<i32>} : memref<8x32xf32, #tpu.memory_space<vmem>>, vector<8x32xf32>,
    return
  }
  func.func @transform_0(%arg0: i32) -> (i32, i32) {
    %c0_i32 = arith.constant 0 : i32
    %c0_i32_0 = arith.constant 0 : i32
    return %arg0, %c0_i32 : i32, i32
  }
  func.func @transform_1(%arg0: i32) -> (i32, i32) {
    %c0_i32 = arith.constant 0 : i32
    %c0_i32_0 = arith.constant 0 : i32
    %c0_i32_1 = arith.constant 0 : i32
    return %c0_i32, %c0_i32_0 : i32, i32
  }
  func.func @transform_2(%arg0: i32) -> (i32, i32) {
    %c0_i32 = arith.constant 0 : i32
    %c0_i32_0 = arith.constant 0 : i32
    %c0_i32_1 = arith.constant 0 : i32
    return %c0_i32, %c0_i32_0 : i32, i32
  }
  func.func @transform_3(%arg0: i32) -> (i32, i32) {
    %c0_i32 = arith.constant 0 : i32
    %c0_i32_0 = arith.constant 0 : i32
    return %arg0, %c0_i32 : i32, i32
  }
}

module attributes {stable_mosaic.version = 11 : i64} {
  func.func @ln_qkv_kernel(%arg0: i32, %arg1: memref<8x32xf32, #tpu.memory_space<vmem>>, %arg2: memref<1x32xf32, #tpu.memory_space<vmem>>, %arg3: memref<1x32xf32, #tpu.memory_space<vmem>>, %arg4: memref<32x96xbf16, #tpu.memory_space<vmem>>, %arg5: memref<1x96xf32, #tpu.memory_space<vmem>>, %arg6: memref<8x96xbf16, #tpu.memory_space<vmem>>) attributes {dimension_semantics = [#tpu.dimension_semantics<parallel>], iteration_bounds = array<i64: 2>, scalar_prefetch = 0 : i64, scratch_operands = 0 : i64, tpu.core_type = #tpu.core_type<tc>, window_params = [{transform_indices = @transform_0, window_bounds = array<i64: 8, 32>}, {pipeline_mode = #tpu.pipeline_mode<synchronous>, transform_indices = @transform_1, window_bounds = array<i64: 1, 32>}, {pipeline_mode = #tpu.pipeline_mode<synchronous>, transform_indices = @transform_2, window_bounds = array<i64: 1, 32>}, {pipeline_mode = #tpu.pipeline_mode<synchronous>, transform_indices = @transform_3, window_bounds = array<i64: 32, 96>}, {pipeline_mode = #tpu.pipeline_mode<synchronous>, transform_indices = @transform_4, window_bounds = array<i64: 1, 96>}, {transform_indices = @transform_5, window_bounds = array<i64: 8, 96>}]} {
    %c0 = arith.constant 0 : index
    %c0_0 = arith.constant 0 : index
    %0 = vector.load %arg1[%c0, %c0_0] : memref<8x32xf32, #tpu.memory_space<vmem>>, vector<8x32xf32>
    %c0_1 = arith.constant 0 : index
    %c0_2 = arith.constant 0 : index
    %1 = vector.load %arg2[%c0_1, %c0_2] : memref<1x32xf32, #tpu.memory_space<vmem>>, vector<1x32xf32>
    %c0_3 = arith.constant 0 : index
    %c0_4 = arith.constant 0 : index
    %2 = vector.load %arg3[%c0_3, %c0_4] : memref<1x32xf32, #tpu.memory_space<vmem>>, vector<1x32xf32>
    %cst = arith.constant dense<0.000000e+00> : vector<8xf32>
    %3 = vector.multi_reduction <add>, %0, %cst [1] : vector<8x32xf32> to vector<8xf32>
    %4 = vector.shape_cast %3 : vector<8xf32> to vector<8x1xf32>
    %cst_5 = arith.constant 3.200000e+01 : f32
    %5 = vector.broadcast %cst_5 : f32 to vector<8x1xf32>
    %6 = arith.divf %4, %5 : vector<8x1xf32>
    %7 = vector.broadcast %6 : vector<8x1xf32> to vector<8x32xf32>
    %8 = arith.subf %0, %7 : vector<8x32xf32>
    %9 = arith.mulf %8, %8 : vector<8x32xf32>
    %cst_6 = arith.constant dense<0.000000e+00> : vector<8xf32>
    %10 = vector.multi_reduction <add>, %9, %cst_6 [1] : vector<8x32xf32> to vector<8xf32>
    %11 = vector.shape_cast %10 : vector<8xf32> to vector<8x1xf32>
    %cst_7 = arith.constant 0.0322580636 : f32
    %12 = vector.broadcast %cst_7 : f32 to vector<8x1xf32>
    %13 = arith.mulf %11, %12 : vector<8x1xf32>
    %14 = math.sqrt %13 : vector<8x1xf32>
    %15 = vector.broadcast %1 : vector<1x32xf32> to vector<8x32xf32>
    %16 = arith.mulf %15, %8 : vector<8x32xf32>
    %cst_8 = arith.constant 9.99999997E-7 : f32
    %17 = vector.broadcast %cst_8 : f32 to vector<8x1xf32>
    %18 = arith.addf %14, %17 : vector<8x1xf32>
    %19 = vector.broadcast %18 : vector<8x1xf32> to vector<8x32xf32>
    %20 = arith.divf %16, %19 : vector<8x32xf32>
    %21 = vector.broadcast %2 : vector<1x32xf32> to vector<8x32xf32>
    %22 = arith.addf %20, %21 : vector<8x32xf32>
    %23 = arith.truncf %22 : vector<8x32xf32> to vector<8x32xbf16>
    %c0_9 = arith.constant 0 : index
    %c0_10 = arith.constant 0 : index
    %24 = vector.load %arg4[%c0_9, %c0_10] : memref<32x96xbf16, #tpu.memory_space<vmem>>, vector<32x96xbf16>
    %cst_11 = arith.constant dense<0.000000e+00> : vector<8x96xf32>
    %25 = tpu.matmul %23, %24, %cst_11 {dimension_numbers = #tpu.dot_dimension_numbers<[1], [0], [0], [1], [0, 0, 1, 1], [], []>} : vector<8x32xbf16>, vector<32x96xbf16>, vector<8x96xf32> -> vector<8x96xf32>
    %c0_12 = arith.constant 0 : index
    %c0_13 = arith.constant 0 : index
    %26 = vector.load %arg5[%c0_12, %c0_13] : memref<1x96xf32, #tpu.memory_space<vmem>>, vector<1x96xf32>
    %27 = vector.broadcast %26 : vector<1x96xf32> to vector<8x96xf32>
    %28 = arith.addf %25, %27 : vector<8x96xf32>
    %29 = arith.truncf %28 : vector<8x96xf32> to vector<8x96xbf16>
    %c0_14 = arith.constant 0 : index
    %c0_15 = arith.constant 0 : index
    %30 = vector.load %arg6[%c0_14, %c0_15] : memref<8x96xbf16, #tpu.memory_space<vmem>>, vector<8x96xbf16>
    tpu.vector_store %arg6[%c0_14, %c0_15], %29 {strides = array<i32>} : memref<8x96xbf16, #tpu.memory_space<vmem>>, vector<8x96xbf16>,
    return
  }
  func.func @transform_0(%arg0: i32) -> (i32, i32) {
    %c0_i32 = arith.constant 0 : i32
    %c0_i32_0 = arith.constant 0 : i32
    return %arg0, %c0_i32 : i32, i32
  }
  func.func @transform_1(%arg0: i32) -> (i32, i32) {
    %c0_i32 = arith.constant 0 : i32
    %c0_i32_0 = arith.constant 0 : i32
    %c0_i32_1 = arith.constant 0 : i32
    return %c0_i32, %c0_i32_0 : i32, i32
  }
  func.func @transform_2(%arg0: i32) -> (i32, i32) {
    %c0_i32 = arith.constant 0 : i32
    %c0_i32_0 = arith.constant 0 : i32
    %c0_i32_1 = arith.constant 0 : i32
    return %c0_i32, %c0_i32_0 : i32, i32
  }
  func.func @transform_3(%arg0: i32) -> (i32, i32) {
    %c0_i32 = arith.constant 0 : i32
    %c0_i32_0 = arith.constant 0 : i32
    %c0_i32_1 = arith.constant 0 : i32
    return %c0_i32, %c0_i32_0 : i32, i32
  }
  func.func @transform_4(%arg0: i32) -> (i32, i32) {
    %c0_i32 = arith.constant 0 : i32
    %c0_i32_0 = arith.constant 0 : i32
    %c0_i32_1 = arith.constant 0 : i32
    return %c0_i32, %c0_i32_0 : i32, i32
  }
  func.func @transform_5(%arg0: i32) -> (i32, i32) {
    %c0_i32 = arith.constant 0 : i32
    %c0_i32_0 = arith.constant 0 : i32
    return %arg0, %c0_i32 : i32, i32
  }
}

module attributes {stable_mosaic.version = 11 : i64} {
  func.func @attn_wo_residual_kernel(%arg0: i32, %arg1: i32, %arg2: memref<1x8x96xbf16, #tpu.memory_space<vmem>>, %arg3: memref<1x1x8xf32, #tpu.memory_space<vmem>>, %arg4: memref<32x32xbf16, #tpu.memory_space<vmem>>, %arg5: memref<1x32xf32, #tpu.memory_space<vmem>>, %arg6: memref<1x8x32xf32, #tpu.memory_space<vmem>>, %arg7: memref<1x8x32xf32, #tpu.memory_space<vmem>>, %arg8: memref<8x32xbf16, #tpu.memory_space<vmem>>) attributes {dimension_semantics = [#tpu.dimension_semantics<parallel>, #tpu.dimension_semantics<parallel>], iteration_bounds = array<i64: 2, 1>, scalar_prefetch = 0 : i64, scratch_operands = 1 : i64, tpu.core_type = #tpu.core_type<tc>, window_params = [{transform_indices = @transform_0, window_bounds = array<i64: 1, 8, 96>}, {transform_indices = @transform_1, window_bounds = array<i64: 1, 1, 8>}, {pipeline_mode = #tpu.pipeline_mode<synchronous>, transform_indices = @transform_2, window_bounds = array<i64: 32, 32>}, {pipeline_mode = #tpu.pipeline_mode<synchronous>, transform_indices = @transform_3, window_bounds = array<i64: 1, 32>}, {transform_indices = @transform_4, window_bounds = array<i64: 1, 8, 32>}, {transform_indices = @transform_5, window_bounds = array<i64: 1, 8, 32>}]} {
    %c8_i32 = arith.constant 8 : i32
    %0 = arith.muli %arg1, %c8_i32 : i32
    %1 = tpu.assume_multiple %0, 8 : i32
    %c0 = arith.constant 0 : index
    %2 = arith.index_cast %1 : i32 to index
    %c0_0 = arith.constant 0 : index
    %3 = vector.load %arg2[%c0, %2, %c0_0] : memref<1x8x96xbf16, #tpu.memory_space<vmem>>, vector<1x8x96xbf16>
    %4 = vector.shape_cast %3 : vector<1x8x96xbf16> to vector<8x96xbf16>
    %c0_1 = arith.constant 0 : index
    %c0_2 = arith.constant 0 : index
    %c0_3 = arith.constant 0 : index
    %5 = vector.load %arg3[%c0_1, %c0_2, %c0_3] : memref<1x1x8xf32, #tpu.memory_space<vmem>>, vector<1x1x8xf32>
    %6 = vector.shape_cast %5 : vector<1x1x8xf32> to vector<1x8xf32>
    %cst = arith.constant 1.000000e+00 : f32
    %7 = vector.broadcast %cst : f32 to vector<1x8xf32>
    %8 = arith.subf %6, %7 : vector<1x8xf32>
    %cst_4 = arith.constant 1.000000e+09 : f32
    %9 = vector.broadcast %cst_4 : f32 to vector<1x8xf32>
    %10 = arith.mulf %8, %9 : vector<1x8xf32>
    %11 = vector.extract_strided_slice %4 {offsets = [0, 0], sizes = [8, 8], strides = [1, 1]} : vector<8x96xbf16> to vector<8x8xbf16>
    %c0_5 = arith.constant 0 : index
    %c0_6 = arith.constant 0 : index
    %c32 = arith.constant 32 : index
    %12 = vector.load %arg2[%c0_5, %c0_6, %c32] : memref<1x8x96xbf16, #tpu.memory_space<vmem>>, vector<1x8x8xbf16>
    %13 = vector.shape_cast %12 : vector<1x8x8xbf16> to vector<8x8xbf16>
    %c0_7 = arith.constant 0 : index
    %c0_8 = arith.constant 0 : index
    %c64 = arith.constant 64 : index
    %14 = vector.load %arg2[%c0_7, %c0_8, %c64] : memref<1x8x96xbf16, #tpu.memory_space<vmem>>, vector<1x8x8xbf16>
    %15 = vector.shape_cast %14 : vector<1x8x8xbf16> to vector<8x8xbf16>
    %cst_9 = arith.constant dense<0.000000e+00> : vector<8x8xf32>
    %16 = tpu.matmul %11, %13, %cst_9 {dimension_numbers = #tpu.dot_dimension_numbers<[1], [1], [0], [0], [0, 0, 1, 0], [], []>} : vector<8x8xbf16>, vector<8x8xbf16>, vector<8x8xf32> -> vector<8x8xf32>
    %cst_10 = arith.constant 0.353553385 : f32
    %17 = vector.broadcast %cst_10 : f32 to vector<8x8xf32>
    %18 = arith.mulf %16, %17 : vector<8x8xf32>
    %19 = vector.broadcast %10 : vector<1x8xf32> to vector<8x8xf32>
    %20 = arith.addf %18, %19 : vector<8x8xf32>
    %cst_11 = arith.constant dense<0xFF800000> : vector<8xf32>
    %21 = vector.multi_reduction <maximumf>, %20, %cst_11 [1] : vector<8x8xf32> to vector<8xf32>
    %22 = vector.shape_cast %21 : vector<8xf32> to vector<8x1xf32>
    %23 = vector.broadcast %22 : vector<8x1xf32> to vector<8x8xf32>
    %24 = arith.subf %20, %23 : vector<8x8xf32>
    %25 = math.exp %24 : vector<8x8xf32>
    %cst_12 = arith.constant dense<0.000000e+00> : vector<8xf32>
    %26 = vector.multi_reduction <add>, %25, %cst_12 [1] : vector<8x8xf32> to vector<8xf32>
    %27 = vector.shape_cast %26 : vector<8xf32> to vector<8x1xf32>
    %28 = vector.broadcast %27 : vector<8x1xf32> to vector<8x8xf32>
    %29 = arith.divf %25, %28 : vector<8x8xf32>
    %30 = arith.truncf %29 : vector<8x8xf32> to vector<8x8xbf16>
    %cst_13 = arith.constant dense<0.000000e+00> : vector<8x8xf32>
    %31 = tpu.matmul %30, %15, %cst_13 {dimension_numbers = #tpu.dot_dimension_numbers<[1], [0], [0], [1], [0, 0, 1, 1], [], []>} : vector<8x8xbf16>, vector<8x8xbf16>, vector<8x8xf32> -> vector<8x8xf32>
    %32 = arith.truncf %31 : vector<8x8xf32> to vector<8x8xbf16>
    %c0_14 = arith.constant 0 : index
    %c0_15 = arith.constant 0 : index
    %33 = vector.load %arg8[%c0_14, %c0_15] : memref<8x32xbf16, #tpu.memory_space<vmem>>, vector<8x8xbf16>
    tpu.vector_store %arg8[%c0_14, %c0_15], %32 {strides = array<i32>} : memref<8x32xbf16, #tpu.memory_space<vmem>>, vector<8x8xbf16>,
    %34 = vector.extract_strided_slice %4 {offsets = [0, 8], sizes = [8, 8], strides = [1, 1]} : vector<8x96xbf16> to vector<8x8xbf16>
    %c0_16 = arith.constant 0 : index
    %c0_17 = arith.constant 0 : index
    %c40 = arith.constant 40 : index
    %35 = vector.load %arg2[%c0_16, %c0_17, %c40] : memref<1x8x96xbf16, #tpu.memory_space<vmem>>, vector<1x8x8xbf16>
    %36 = vector.shape_cast %35 : vector<1x8x8xbf16> to vector<8x8xbf16>
    %c0_18 = arith.constant 0 : index
    %c0_19 = arith.constant 0 : index
    %c72 = arith.constant 72 : index
    %37 = vector.load %arg2[%c0_18, %c0_19, %c72] : memref<1x8x96xbf16, #tpu.memory_space<vmem>>, vector<1x8x8xbf16>
    %38 = vector.shape_cast %37 : vector<1x8x8xbf16> to vector<8x8xbf16>
    %cst_20 = arith.constant dense<0.000000e+00> : vector<8x8xf32>
    %39 = tpu.matmul %34, %36, %cst_20 {dimension_numbers = #tpu.dot_dimension_numbers<[1], [1], [0], [0], [0, 0, 1, 0], [], []>} : vector<8x8xbf16>, vector<8x8xbf16>, vector<8x8xf32> -> vector<8x8xf32>
    %cst_21 = arith.constant 0.353553385 : f32
    %40 = vector.broadcast %cst_21 : f32 to vector<8x8xf32>
    %41 = arith.mulf %39, %40 : vector<8x8xf32>
    %42 = vector.broadcast %10 : vector<1x8xf32> to vector<8x8xf32>
    %43 = arith.addf %41, %42 : vector<8x8xf32>
    %cst_22 = arith.constant dense<0xFF800000> : vector<8xf32>
    %44 = vector.multi_reduction <maximumf>, %43, %cst_22 [1] : vector<8x8xf32> to vector<8xf32>
    %45 = vector.shape_cast %44 : vector<8xf32> to vector<8x1xf32>
    %46 = vector.broadcast %45 : vector<8x1xf32> to vector<8x8xf32>
    %47 = arith.subf %43, %46 : vector<8x8xf32>
    %48 = math.exp %47 : vector<8x8xf32>
    %cst_23 = arith.constant dense<0.000000e+00> : vector<8xf32>
    %49 = vector.multi_reduction <add>, %48, %cst_23 [1] : vector<8x8xf32> to vector<8xf32>
    %50 = vector.shape_cast %49 : vector<8xf32> to vector<8x1xf32>
    %51 = vector.broadcast %50 : vector<8x1xf32> to vector<8x8xf32>
    %52 = arith.divf %48, %51 : vector<8x8xf32>
    %53 = arith.truncf %52 : vector<8x8xf32> to vector<8x8xbf16>
    %cst_24 = arith.constant dense<0.000000e+00> : vector<8x8xf32>
    %54 = tpu.matmul %53, %38, %cst_24 {dimension_numbers = #tpu.dot_dimension_numbers<[1], [0], [0], [1], [0, 0, 1, 1], [], []>} : vector<8x8xbf16>, vector<8x8xbf16>, vector<8x8xf32> -> vector<8x8xf32>
    %55 = arith.truncf %54 : vector<8x8xf32> to vector<8x8xbf16>
    %c0_25 = arith.constant 0 : index
    %c8 = arith.constant 8 : index
    %56 = vector.load %arg8[%c0_25, %c8] : memref<8x32xbf16, #tpu.memory_space<vmem>>, vector<8x8xbf16>
    tpu.vector_store %arg8[%c0_25, %c8], %55 {strides = array<i32>} : memref<8x32xbf16, #tpu.memory_space<vmem>>, vector<8x8xbf16>,
    %57 = vector.extract_strided_slice %4 {offsets = [0, 16], sizes = [8, 8], strides = [1, 1]} : vector<8x96xbf16> to vector<8x8xbf16>
    %c0_26 = arith.constant 0 : index
    %c0_27 = arith.constant 0 : index
    %c48 = arith.constant 48 : index
    %58 = vector.load %arg2[%c0_26, %c0_27, %c48] : memref<1x8x96xbf16, #tpu.memory_space<vmem>>, vector<1x8x8xbf16>
    %59 = vector.shape_cast %58 : vector<1x8x8xbf16> to vector<8x8xbf16>
    %c0_28 = arith.constant 0 : index
    %c0_29 = arith.constant 0 : index
    %c80 = arith.constant 80 : index
    %60 = vector.load %arg2[%c0_28, %c0_29, %c80] : memref<1x8x96xbf16, #tpu.memory_space<vmem>>, vector<1x8x8xbf16>
    %61 = vector.shape_cast %60 : vector<1x8x8xbf16> to vector<8x8xbf16>
    %cst_30 = arith.constant dense<0.000000e+00> : vector<8x8xf32>
    %62 = tpu.matmul %57, %59, %cst_30 {dimension_numbers = #tpu.dot_dimension_numbers<[1], [1], [0], [0], [0, 0, 1, 0], [], []>} : vector<8x8xbf16>, vector<8x8xbf16>, vector<8x8xf32> -> vector<8x8xf32>
    %cst_31 = arith.constant 0.353553385 : f32
    %63 = vector.broadcast %cst_31 : f32 to vector<8x8xf32>
    %64 = arith.mulf %62, %63 : vector<8x8xf32>
    %65 = vector.broadcast %10 : vector<1x8xf32> to vector<8x8xf32>
    %66 = arith.addf %64, %65 : vector<8x8xf32>
    %cst_32 = arith.constant dense<0xFF800000> : vector<8xf32>
    %67 = vector.multi_reduction <maximumf>, %66, %cst_32 [1] : vector<8x8xf32> to vector<8xf32>
    %68 = vector.shape_cast %67 : vector<8xf32> to vector<8x1xf32>
    %69 = vector.broadcast %68 : vector<8x1xf32> to vector<8x8xf32>
    %70 = arith.subf %66, %69 : vector<8x8xf32>
    %71 = math.exp %70 : vector<8x8xf32>
    %cst_33 = arith.constant dense<0.000000e+00> : vector<8xf32>
    %72 = vector.multi_reduction <add>, %71, %cst_33 [1] : vector<8x8xf32> to vector<8xf32>
    %73 = vector.shape_cast %72 : vector<8xf32> to vector<8x1xf32>
    %74 = vector.broadcast %73 : vector<8x1xf32> to vector<8x8xf32>
    %75 = arith.divf %71, %74 : vector<8x8xf32>
    %76 = arith.truncf %75 : vector<8x8xf32> to vector<8x8xbf16>
    %cst_34 = arith.constant dense<0.000000e+00> : vector<8x8xf32>
    %77 = tpu.matmul %76, %61, %cst_34 {dimension_numbers = #tpu.dot_dimension_numbers<[1], [0], [0], [1], [0, 0, 1, 1], [], []>} : vector<8x8xbf16>, vector<8x8xbf16>, vector<8x8xf32> -> vector<8x8xf32>
    %78 = arith.truncf %77 : vector<8x8xf32> to vector<8x8xbf16>
    %c0_35 = arith.constant 0 : index
    %c16 = arith.constant 16 : index
    %79 = vector.load %arg8[%c0_35, %c16] : memref<8x32xbf16, #tpu.memory_space<vmem>>, vector<8x8xbf16>
    tpu.vector_store %arg8[%c0_35, %c16], %78 {strides = array<i32>} : memref<8x32xbf16, #tpu.memory_space<vmem>>, vector<8x8xbf16>,
    %80 = vector.extract_strided_slice %4 {offsets = [0, 24], sizes = [8, 8], strides = [1, 1]} : vector<8x96xbf16> to vector<8x8xbf16>
    %c0_36 = arith.constant 0 : index
    %c0_37 = arith.constant 0 : index
    %c56 = arith.constant 56 : index
    %81 = vector.load %arg2[%c0_36, %c0_37, %c56] : memref<1x8x96xbf16, #tpu.memory_space<vmem>>, vector<1x8x8xbf16>
    %82 = vector.shape_cast %81 : vector<1x8x8xbf16> to vector<8x8xbf16>
    %c0_38 = arith.constant 0 : index
    %c0_39 = arith.constant 0 : index
    %c88 = arith.constant 88 : index
    %83 = vector.load %arg2[%c0_38, %c0_39, %c88] : memref<1x8x96xbf16, #tpu.memory_space<vmem>>, vector<1x8x8xbf16>
    %84 = vector.shape_cast %83 : vector<1x8x8xbf16> to vector<8x8xbf16>
    %cst_40 = arith.constant dense<0.000000e+00> : vector<8x8xf32>
    %85 = tpu.matmul %80, %82, %cst_40 {dimension_numbers = #tpu.dot_dimension_numbers<[1], [1], [0], [0], [0, 0, 1, 0], [], []>} : vector<8x8xbf16>, vector<8x8xbf16>, vector<8x8xf32> -> vector<8x8xf32>
    %cst_41 = arith.constant 0.353553385 : f32
    %86 = vector.broadcast %cst_41 : f32 to vector<8x8xf32>
    %87 = arith.mulf %85, %86 : vector<8x8xf32>
    %88 = vector.broadcast %10 : vector<1x8xf32> to vector<8x8xf32>
    %89 = arith.addf %87, %88 : vector<8x8xf32>
    %cst_42 = arith.constant dense<0xFF800000> : vector<8xf32>
    %90 = vector.multi_reduction <maximumf>, %89, %cst_42 [1] : vector<8x8xf32> to vector<8xf32>
    %91 = vector.shape_cast %90 : vector<8xf32> to vector<8x1xf32>
    %92 = vector.broadcast %91 : vector<8x1xf32> to vector<8x8xf32>
    %93 = arith.subf %89, %92 : vector<8x8xf32>
    %94 = math.exp %93 : vector<8x8xf32>
    %cst_43 = arith.constant dense<0.000000e+00> : vector<8xf32>
    %95 = vector.multi_reduction <add>, %94, %cst_43 [1] : vector<8x8xf32> to vector<8xf32>
    %96 = vector.shape_cast %95 : vector<8xf32> to vector<8x1xf32>
    %97 = vector.broadcast %96 : vector<8x1xf32> to vector<8x8xf32>
    %98 = arith.divf %94, %97 : vector<8x8xf32>
    %99 = arith.truncf %98 : vector<8x8xf32> to vector<8x8xbf16>
    %cst_44 = arith.constant dense<0.000000e+00> : vector<8x8xf32>
    %100 = tpu.matmul %99, %84, %cst_44 {dimension_numbers = #tpu.dot_dimension_numbers<[1], [0], [0], [1], [0, 0, 1, 1], [], []>} : vector<8x8xbf16>, vector<8x8xbf16>, vector<8x8xf32> -> vector<8x8xf32>
    %101 = arith.truncf %100 : vector<8x8xf32> to vector<8x8xbf16>
    %c0_45 = arith.constant 0 : index
    %c24 = arith.constant 24 : index
    %102 = vector.load %arg8[%c0_45, %c24] : memref<8x32xbf16, #tpu.memory_space<vmem>>, vector<8x8xbf16>
    tpu.vector_store %arg8[%c0_45, %c24], %101 {strides = array<i32>} : memref<8x32xbf16, #tpu.memory_space<vmem>>, vector<8x8xbf16>,
    %c0_46 = arith.constant 0 : index
    %c0_47 = arith.constant 0 : index
    %103 = vector.load %arg8[%c0_46, %c0_47] : memref<8x32xbf16, #tpu.memory_space<vmem>>, vector<8x32xbf16>
    %c0_48 = arith.constant 0 : index
    %c0_49 = arith.constant 0 : index
    %104 = vector.load %arg4[%c0_48, %c0_49] : memref<32x32xbf16, #tpu.memory_space<vmem>>, vector<32x32xbf16>
    %cst_50 = arith.constant dense<0.000000e+00> : vector<8x32xf32>
    %105 = tpu.matmul %103, %104, %cst_50 {dimension_numbers = #tpu.dot_dimension_numbers<[1], [0], [0], [1], [0, 0, 1, 1], [], []>} : vector<8x32xbf16>, vector<32x32xbf16>, vector<8x32xf32> -> vector<8x32xf32>
    %c0_51 = arith.constant 0 : index
    %c0_52 = arith.constant 0 : index
    %106 = vector.load %arg5[%c0_51, %c0_52] : memref<1x32xf32, #tpu.memory_space<vmem>>, vector<1x32xf32>
    %107 = vector.broadcast %106 : vector<1x32xf32> to vector<8x32xf32>
    %108 = arith.addf %105, %107 : vector<8x32xf32>
    %c0_53 = arith.constant 0 : index
    %c0_54 = arith.constant 0 : index
    %c0_55 = arith.constant 0 : index
    %109 = vector.load %arg6[%c0_53, %c0_54, %c0_55] : memref<1x8x32xf32, #tpu.memory_space<vmem>>, vector<1x8x32xf32>
    %110 = vector.shape_cast %109 : vector<1x8x32xf32> to vector<8x32xf32>
    %111 = arith.addf %110, %108 : vector<8x32xf32>
    %c0_56 = arith.constant 0 : index
    %c0_57 = arith.constant 0 : index
    %c0_58 = arith.constant 0 : index
    %112 = vector.load %arg7[%c0_56, %c0_57, %c0_58] : memref<1x8x32xf32, #tpu.memory_space<vmem>>, vector<1x8x32xf32>
    %113 = vector.shape_cast %112 : vector<1x8x32xf32> to vector<8x32xf32>
    %114 = vector.shape_cast %111 : vector<8x32xf32> to vector<1x8x32xf32>
    tpu.vector_store %arg7[%c0_56, %c0_57, %c0_58], %114 {strides = array<i32>} : memref<1x8x32xf32, #tpu.memory_space<vmem>>, vector<1x8x32xf32>,
    return
  }
  func.func @transform_0(%arg0: i32, %arg1: i32) -> (i32, i32, i32) {
    %c0_i32 = arith.constant 0 : i32
    %c0_i32_0 = arith.constant 0 : i32
    %c0_i32_1 = arith.constant 0 : i32
    return %arg0, %c0_i32, %c0_i32_0 : i32, i32, i32
  }
  func.func @transform_1(%arg0: i32, %arg1: i32) -> (i32, i32, i32) {
    %c0_i32 = arith.constant 0 : i32
    %c0_i32_0 = arith.constant 0 : i32
    %c0_i32_1 = arith.constant 0 : i32
    return %arg0, %c0_i32, %c0_i32_0 : i32, i32, i32
  }
  func.func @transform_2(%arg0: i32, %arg1: i32) -> (i32, i32) {
    %c0_i32 = arith.constant 0 : i32
    %c0_i32_0 = arith.constant 0 : i32
    %c0_i32_1 = arith.constant 0 : i32
    return %c0_i32, %c0_i32_0 : i32, i32
  }
  func.func @transform_3(%arg0: i32, %arg1: i32) -> (i32, i32) {
    %c0_i32 = arith.constant 0 : i32
    %c0_i32_0 = arith.constant 0 : i32
    %c0_i32_1 = arith.constant 0 : i32
    return %c0_i32, %c0_i32_0 : i32, i32
  }
  func.func @transform_4(%arg0: i32, %arg1: i32) -> (i32, i32, i32) {
    %c0_i32 = arith.constant 0 : i32
    %c0_i32_0 = arith.constant 0 : i32
    return %arg0, %arg1, %c0_i32 : i32, i32, i32
  }
  func.func @transform_5(%arg0: i32, %arg1: i32) -> (i32, i32, i32) {
    %c0_i32 = arith.constant 0 : i32
    %c0_i32_0 = arith.constant 0 : i32
    return %arg0, %arg1, %c0_i32 : i32, i32, i32
  }
}

module attributes {stable_mosaic.version = 11 : i64} {
  func.func @ln_ffn_residual_kernel(%arg0: i32, %arg1: i32, %arg2: memref<8x32xf32, #tpu.memory_space<vmem>>, %arg3: memref<1x32xf32, #tpu.memory_space<vmem>>, %arg4: memref<1x32xf32, #tpu.memory_space<vmem>>, %arg5: memref<32x64xbf16, #tpu.memory_space<vmem>>, %arg6: memref<1x64xf32, #tpu.memory_space<vmem>>, %arg7: memref<64x32xbf16, #tpu.memory_space<vmem>>, %arg8: memref<1x32xf32, #tpu.memory_space<vmem>>, %arg9: memref<8x32xf32, #tpu.memory_space<vmem>>, %arg10: memref<8x32xbf16, #tpu.memory_space<vmem>>, %arg11: memref<8x32xf32, #tpu.memory_space<vmem>>) attributes {dimension_semantics = [#tpu.dimension_semantics<parallel>, #tpu.dimension_semantics<arbitrary>], iteration_bounds = array<i64: 2, 1>, scalar_prefetch = 0 : i64, scratch_operands = 2 : i64, tpu.core_type = #tpu.core_type<tc>, window_params = [{transform_indices = @transform_0, window_bounds = array<i64: 8, 32>}, {pipeline_mode = #tpu.pipeline_mode<synchronous>, transform_indices = @transform_1, window_bounds = array<i64: 1, 32>}, {pipeline_mode = #tpu.pipeline_mode<synchronous>, transform_indices = @transform_2, window_bounds = array<i64: 1, 32>}, {transform_indices = @transform_3, window_bounds = array<i64: 32, 64>}, {transform_indices = @transform_4, window_bounds = array<i64: 1, 64>}, {transform_indices = @transform_5, window_bounds = array<i64: 64, 32>}, {pipeline_mode = #tpu.pipeline_mode<synchronous>, transform_indices = @transform_6, window_bounds = array<i64: 1, 32>}, {transform_indices = @transform_7, window_bounds = array<i64: 8, 32>}]} {
    %c0_i32 = arith.constant 0 : i32
    %0 = arith.cmpi eq, %arg1, %c0_i32 : i32
    %1 = arith.extui %0 : i1 to i32
    %c0_i32_0 = arith.constant 0 : i32
    %2 = arith.cmpi ne, %1, %c0_i32_0 : i32
    scf.if %2 {
      %c0_16 = arith.constant 0 : index
      %c0_17 = arith.constant 0 : index
      %20 = vector.load %arg2[%c0_16, %c0_17] : memref<8x32xf32, #tpu.memory_space<vmem>>, vector<8x32xf32>
      %c0_18 = arith.constant 0 : index
      %c0_19 = arith.constant 0 : index
      %21 = vector.load %arg3[%c0_18, %c0_19] : memref<1x32xf32, #tpu.memory_space<vmem>>, vector<1x32xf32>
      %c0_20 = arith.constant 0 : index
      %c0_21 = arith.constant 0 : index
      %22 = vector.load %arg4[%c0_20, %c0_21] : memref<1x32xf32, #tpu.memory_space<vmem>>, vector<1x32xf32>
      %cst_22 = arith.constant dense<0.000000e+00> : vector<8xf32>
      %23 = vector.multi_reduction <add>, %20, %cst_22 [1] : vector<8x32xf32> to vector<8xf32>
      %24 = vector.shape_cast %23 : vector<8xf32> to vector<8x1xf32>
      %cst_23 = arith.constant 3.200000e+01 : f32
      %25 = vector.broadcast %cst_23 : f32 to vector<8x1xf32>
      %26 = arith.divf %24, %25 : vector<8x1xf32>
      %27 = vector.broadcast %26 : vector<8x1xf32> to vector<8x32xf32>
      %28 = arith.subf %20, %27 : vector<8x32xf32>
      %29 = arith.mulf %28, %28 : vector<8x32xf32>
      %cst_24 = arith.constant dense<0.000000e+00> : vector<8xf32>
      %30 = vector.multi_reduction <add>, %29, %cst_24 [1] : vector<8x32xf32> to vector<8xf32>
      %31 = vector.shape_cast %30 : vector<8xf32> to vector<8x1xf32>
      %cst_25 = arith.constant 0.0322580636 : f32
      %32 = vector.broadcast %cst_25 : f32 to vector<8x1xf32>
      %33 = arith.mulf %31, %32 : vector<8x1xf32>
      %34 = math.sqrt %33 : vector<8x1xf32>
      %35 = vector.broadcast %21 : vector<1x32xf32> to vector<8x32xf32>
      %36 = arith.mulf %35, %28 : vector<8x32xf32>
      %cst_26 = arith.constant 9.99999997E-7 : f32
      %37 = vector.broadcast %cst_26 : f32 to vector<8x1xf32>
      %38 = arith.addf %34, %37 : vector<8x1xf32>
      %39 = vector.broadcast %38 : vector<8x1xf32> to vector<8x32xf32>
      %40 = arith.divf %36, %39 : vector<8x32xf32>
      %41 = vector.broadcast %22 : vector<1x32xf32> to vector<8x32xf32>
      %42 = arith.addf %40, %41 : vector<8x32xf32>
      %43 = arith.truncf %42 : vector<8x32xf32> to vector<8x32xbf16>
      %c0_27 = arith.constant 0 : index
      %c0_28 = arith.constant 0 : index
      %44 = vector.load %arg10[%c0_27, %c0_28] : memref<8x32xbf16, #tpu.memory_space<vmem>>, vector<8x32xbf16>
      tpu.vector_store %arg10[%c0_27, %c0_28], %43 {strides = array<i32>} : memref<8x32xbf16, #tpu.memory_space<vmem>>, vector<8x32xbf16>,
      %cst_29 = arith.constant 0.000000e+00 : f32
      %45 = vector.broadcast %cst_29 : f32 to vector<8x32xf32>
      %c0_30 = arith.constant 0 : index
      %c0_31 = arith.constant 0 : index
      %46 = vector.load %arg11[%c0_30, %c0_31] : memref<8x32xf32, #tpu.memory_space<vmem>>, vector<8x32xf32>
      tpu.vector_store %arg11[%c0_30, %c0_31], %45 {strides = array<i32>} : memref<8x32xf32, #tpu.memory_space<vmem>>, vector<8x32xf32>,
    } else {
    }
    %c0 = arith.constant 0 : index
    %c0_1 = arith.constant 0 : index
    %3 = vector.load %arg10[%c0, %c0_1] : memref<8x32xbf16, #tpu.memory_space<vmem>>, vector<8x32xbf16>
    %c0_2 = arith.constant 0 : index
    %c0_3 = arith.constant 0 : index
    %4 = vector.load %arg5[%c0_2, %c0_3] : memref<32x64xbf16, #tpu.memory_space<vmem>>, vector<32x64xbf16>
    %cst = arith.constant dense<0.000000e+00> : vector<8x64xf32>
    %5 = tpu.matmul %3, %4, %cst {dimension_numbers = #tpu.dot_dimension_numbers<[1], [0], [0], [1], [0, 0, 1, 1], [], []>} : vector<8x32xbf16>, vector<32x64xbf16>, vector<8x64xf32> -> vector<8x64xf32>
    %c0_4 = arith.constant 0 : index
    %c0_5 = arith.constant 0 : index
    %6 = vector.load %arg6[%c0_4, %c0_5] : memref<1x64xf32, #tpu.memory_space<vmem>>, vector<1x64xf32>
    %7 = vector.broadcast %6 : vector<1x64xf32> to vector<8x64xf32>
    %8 = arith.addf %5, %7 : vector<8x64xf32>
    %cst_6 = arith.constant 0.000000e+00 : f32
    %9 = vector.broadcast %cst_6 : f32 to vector<8x64xf32>
    %10 = arith.maximumf %8, %9 : vector<8x64xf32>
    %c0_7 = arith.constant 0 : index
    %c0_8 = arith.constant 0 : index
    %11 = vector.load %arg11[%c0_7, %c0_8] : memref<8x32xf32, #tpu.memory_space<vmem>>, vector<8x32xf32>
    %12 = arith.truncf %10 : vector<8x64xf32> to vector<8x64xbf16>
    %c0_9 = arith.constant 0 : index
    %c0_10 = arith.constant 0 : index
    %13 = vector.load %arg7[%c0_9, %c0_10] : memref<64x32xbf16, #tpu.memory_space<vmem>>, vector<64x32xbf16>
    %cst_11 = arith.constant dense<0.000000e+00> : vector<8x32xf32>
    %14 = tpu.matmul %12, %13, %cst_11 {dimension_numbers = #tpu.dot_dimension_numbers<[1], [0], [0], [1], [0, 0, 1, 1], [], []>} : vector<8x64xbf16>, vector<64x32xbf16>, vector<8x32xf32> -> vector<8x32xf32>
    %15 = arith.addf %11, %14 : vector<8x32xf32>
    %c0_12 = arith.constant 0 : index
    %c0_13 = arith.constant 0 : index
    %16 = vector.load %arg11[%c0_12, %c0_13] : memref<8x32xf32, #tpu.memory_space<vmem>>, vector<8x32xf32>
    tpu.vector_store %arg11[%c0_12, %c0_13], %15 {strides = array<i32>} : memref<8x32xf32, #tpu.memory_space<vmem>>, vector<8x32xf32>,
    %c0_i32_14 = arith.constant 0 : i32
    %17 = arith.cmpi eq, %arg1, %c0_i32_14 : i32
    %18 = arith.extui %17 : i1 to i32
    %c0_i32_15 = arith.constant 0 : i32
    %19 = arith.cmpi ne, %18, %c0_i32_15 : i32
    scf.if %19 {
      %c0_16 = arith.constant 0 : index
      %c0_17 = arith.constant 0 : index
      %20 = vector.load %arg11[%c0_16, %c0_17] : memref<8x32xf32, #tpu.memory_space<vmem>>, vector<8x32xf32>
      %c0_18 = arith.constant 0 : index
      %c0_19 = arith.constant 0 : index
      %21 = vector.load %arg8[%c0_18, %c0_19] : memref<1x32xf32, #tpu.memory_space<vmem>>, vector<1x32xf32>
      %22 = vector.broadcast %21 : vector<1x32xf32> to vector<8x32xf32>
      %23 = arith.addf %20, %22 : vector<8x32xf32>
      %c0_20 = arith.constant 0 : index
      %c0_21 = arith.constant 0 : index
      %24 = vector.load %arg2[%c0_20, %c0_21] : memref<8x32xf32, #tpu.memory_space<vmem>>, vector<8x32xf32>
      %25 = arith.addf %24, %23 : vector<8x32xf32>
      %c0_22 = arith.constant 0 : index
      %c0_23 = arith.constant 0 : index
      %26 = vector.load %arg9[%c0_22, %c0_23] : memref<8x32xf32, #tpu.memory_space<vmem>>, vector<8x32xf32>
      tpu.vector_store %arg9[%c0_22, %c0_23], %25 {strides = array<i32>} : memref<8x32xf32, #tpu.memory_space<vmem>>, vector<8x32xf32>,
    } else {
    }
    return
  }
  func.func @transform_0(%arg0: i32, %arg1: i32) -> (i32, i32) {
    %c0_i32 = arith.constant 0 : i32
    %c0_i32_0 = arith.constant 0 : i32
    return %arg0, %c0_i32 : i32, i32
  }
  func.func @transform_1(%arg0: i32, %arg1: i32) -> (i32, i32) {
    %c0_i32 = arith.constant 0 : i32
    %c0_i32_0 = arith.constant 0 : i32
    %c0_i32_1 = arith.constant 0 : i32
    return %c0_i32, %c0_i32_0 : i32, i32
  }
  func.func @transform_2(%arg0: i32, %arg1: i32) -> (i32, i32) {
    %c0_i32 = arith.constant 0 : i32
    %c0_i32_0 = arith.constant 0 : i32
    %c0_i32_1 = arith.constant 0 : i32
    return %c0_i32, %c0_i32_0 : i32, i32
  }
  func.func @transform_3(%arg0: i32, %arg1: i32) -> (i32, i32) {
    %c0_i32 = arith.constant 0 : i32
    %c0_i32_0 = arith.constant 0 : i32
    return %c0_i32, %arg1 : i32, i32
  }
  func.func @transform_4(%arg0: i32, %arg1: i32) -> (i32, i32) {
    %c0_i32 = arith.constant 0 : i32
    %c0_i32_0 = arith.constant 0 : i32
    return %c0_i32, %arg1 : i32, i32
  }
  func.func @transform_5(%arg0: i32, %arg1: i32) -> (i32, i32) {
    %c0_i32 = arith.constant 0 : i32
    %c0_i32_0 = arith.constant 0 : i32
    return %arg1, %c0_i32 : i32, i32
  }
  func.func @transform_6(%arg0: i32, %arg1: i32) -> (i32, i32) {
    %c0_i32 = arith.constant 0 : i32
    %c0_i32_0 = arith.constant 0 : i32
    %c0_i32_1 = arith.constant 0 : i32
    return %c0_i32, %c0_i32_0 : i32, i32
  }
  func.func @transform_7(%arg0: i32, %arg1: i32) -> (i32, i32) {
    %c0_i32 = arith.constant 0 : i32
    %c0_i32_0 = arith.constant 0 : i32
    return %arg0, %c0_i32 : i32, i32
  }
}

</mosaic_0001>

<llo_original>
// kernel: tpu_custom_call.1
$region0: #{tpu_custom_call.1}
  #allocation0 [shape = 'u32[]', space=smem, size = 0x4, offset = 0x4, fixed_abs, tag = 'smem constant byte address 0x4 - core index']
  #allocation1 [shape = 'u32[144,128]{1,0:T(1,128)}', space=vmem, size = 0x12000, scoped, tag = 'internal scratch']
  %s0 = inlined_call_operand.hbm [shape: f32[8,128], index: 0, kind: input, shape index: {}]
  %s1 = inlined_call_operand.hbm [shape: f32[8,128], index: 1, kind: output, shape index: {}]
  %s2 = sld [smem:[#allocation0]]
  $region18: #{tpu_custom_call.1} parent=0
    _
  %s4 = ssub.s32 1, %s2
  %s5 = scalar_select 0, %s4, %s2
  $region1: #{tpu_custom_call.1} parent=0
    #allocation2 [shape = 'u8[4096]{0}', space=vmem, size = 0x1000, scoped, tag = 'input window, operand 0, single buffered']
    #allocation3 [shape = 's32[1]{0}', space=sflag, size = 0x4, scoped, tag = 'scoped memory for tpu_custom_call.1']
    #allocation4 [shape = 's32[1]{0}', space=sflag, size = 0x4, scoped, tag = 'scoped memory for tpu_custom_call.1']
    #allocation5 [shape = 'u8[4096]{0}', space=vmem, size = 0x1000, scoped, tag = 'output window, operand 0, single buffered']
    %6 = vsyncpa [#allocation3], 0
    %7 = vsyncpa [#allocation4], 0
    // Predicated region
    $region2: #{tpu_custom_call.1} parent=1 // pred_check
      _
    $region3: #{tpu_custom_call.1} parent=1 // pred_check_branch
      %9 = sbr.rel (0) target = $region5
    $region4: #{tpu_custom_call.1} parent=1 // pred_region
      %s11 = ssub.s32 128, 128
      %12 = vsyncadd [#allocation3], %s11
      %s14 = sshll.u32 [#allocation2], 4
      %s15 = int_to_ptr.vmem [resolvable:$true] %s14
      %17 = dma.hbm_to_vmem [thread:$0]  %s0, 128, %s15, [#allocation3]
    $region5: #{tpu_custom_call.1} parent=1 // pred_fallthru
      _
    // Predicated region
    $region6: #{tpu_custom_call.1} parent=1 // pred_check
      _
    $region7: #{tpu_custom_call.1} parent=1 // pred_check_branch
      %19 = sbr.rel (0) target = $region9
    $region8: #{tpu_custom_call.1} parent=1 // pred_region
      %20 = dma.done [#allocation3], 128
    $region9: #{tpu_custom_call.1} parent=1 // pred_fallthru
      _
    %v21 = vld [vmem:[#allocation2] sm:$0xff]
    %v22 = vadd.f32 %v21, 1.0
    %23 = vst [vmem:[#allocation5] sm:$0xff] %v22
    // Predicated region
    $region10: #{tpu_custom_call.1} parent=1 // pred_check
      _
    $region11: #{tpu_custom_call.1} parent=1 // pred_check_branch
      %25 = sbr.rel (0) target = $region13
    $region12: #{tpu_custom_call.1} parent=1 // pred_region
      %s27 = ssub.s32 128, 128
      %28 = vsyncadd [#allocation4], %s27
      %s30 = sshll.u32 [#allocation5], 4
      %s31 = int_to_ptr.vmem [resolvable:$true] %s30
      %33 = dma.vmem_to_hbm [thread:$0]  %s31, 128, %s1, [#allocation4]
    $region13: #{tpu_custom_call.1} parent=1 // pred_fallthru
      _
    // Predicated region
    $region14: #{tpu_custom_call.1} parent=1 // pred_check
      _
    $region15: #{tpu_custom_call.1} parent=1 // pred_check_branch
      %35 = sbr.rel (0) target = $region17
    $region16: #{tpu_custom_call.1} parent=1 // pred_region
      %36 = dma.done [#allocation4], 128
    $region17: #{tpu_custom_call.1} parent=1 // pred_fallthru
      _
    %37 = vsyncpa [#allocation3], 1
    %38 = vsyncpa [#allocation4], 1

// kernel: encoder_forward.13
$region0: #{encoder_forward.13}
  #allocation0 [shape = 'u32[]', space=smem, size = 0x4, offset = 0x4, fixed_abs, tag = 'smem constant byte address 0x4 - core index']
  #allocation1 [shape = 'u32[144,128]{1,0:T(1,128)}', space=vmem, size = 0x12000, scoped, tag = 'internal scratch']
  %s0 = inlined_call_operand.vmem [shape: f32[16,32], index: 0, kind: input, shape index: {}]
  %s1 = inlined_call_operand.vmem [shape: f32[1,32], index: 1, kind: input, shape index: {}]
  %s2 = inlined_call_operand.vmem [shape: f32[1,32], index: 2, kind: input, shape index: {}]
  %s3 = inlined_call_operand.hbm [shape: f32[16,32], index: 3, kind: output, shape index: {}]
  %s4 = sld [smem:[#allocation0]]
  $region45: #{encoder_forward.13} parent=0
    _
  %s6 = ssub.s32 1, %s4
  %s7 = scalar_select 0, %s6, %s4
  $region1: #{encoder_forward.13} parent=0
    #allocation2 [shape = 'u8[8192]{0}', space=vmem, size = 0x2000, scoped, tag = 'output window, operand 0']
    #allocation3 [shape = 's32[2]{0}', space=sflag, size = 0x8, scoped, tag = 'scoped memory for encoder_forward.13']
    %8 = vsyncpa [#allocation3], 0
    %s9 = scalar_lea.sflag [#allocation3], 1
    %10 = vsyncpa %s9, 0
    loop: start=0, step=1, limit=4
    $region2: #{encoder_forward.13} parent=1 // loop_pre_header
      _
    $region3: #{encoder_forward.13} parent=1 // loop_header
      %s12 = sphi 0, %s16
      %p13 = scmp.ge.s32.totalorder %s12, 4
      %s22 = sphi 0, %s24
      %s25 = sphi 0, %s22
      %s26 = sphi 0, %s25
      %s42 = sphi 0, %s26
      %s46 = sphi 0, %s46
      %s48 = sphi 0, %s46
      %s49 = sphi 0, %s48
      %s63 = sphi 0, %s49
      %s67 = sphi 0, %s67
      %s69 = sphi 0, %s67
      %s70 = sphi 0, %s69
      %s84 = sphi 0, %s70
      %s90 = sphi 0, %s92
      %s93 = sphi 0, %s90
      %s94 = sphi 0, %s93
      %s110 = sphi 0, %s94
    $region4: #{encoder_forward.13} parent=1 // loop_header_branch
      %15 = sbr.rel (%p13) target = $region8
    $region5: #{encoder_forward.13} parent=1 // loop_body
      %s17 = ssub.s32 %s12, 1
      %s18 = ssub.s32 %s12, 2
      %s19 = sadd.s32 %s12, 1
      %s20 = ssub.s32 %s12, %s19
      %p21 = scmp.eq.s32.totalorder %s20, 0
      %s23 = sadd.s32 %s22, 1
      %s24 = scalar_select %p21, %s22, %s23
      %p27 = pneg %p21
      %p28 = scmp.eq.s32.totalorder %s12, 1
      %p29 = por %p27, %p28
      %p30 = scmp.ne.s32.totalorder %s22, %s25
      %p31 = scmp.eq.s32.totalorder %s12, 0
      %p32 = por %p30, %p31
      %p33 = scmp.ne.s32.totalorder %s22, %s25
      %p34 = scmp.eq.s32.totalorder %s17, 1
      %p35 = por %p33, %p34
      %p36 = scmp.ne.s32.totalorder %s25, %s26
      %p37 = scmp.eq.s32.totalorder %s17, 0
      %p38 = por %p36, %p37
      %p39 = scmp.ne.s32.totalorder %s25, %s26
      %p40 = scmp.eq.s32.totalorder %s18, 1
      %p41 = por %p39, %p40
      %p43 = scmp.ne.s32.totalorder %s26, %s42
      %p44 = scmp.eq.s32.totalorder %s18, 0
      %p45 = por %p43, %p44
      %s47 = sadd.s32 %s46, 1
      %p50 = scmp.eq.s32.totalorder %s12, 1
      %p51 = scmp.ne.s32.totalorder %s46, %s48
      %p52 = scmp.eq.s32.totalorder %s12, 0
      %p53 = por %p51, %p52
      %p54 = scmp.ne.s32.totalorder %s46, %s48
      %p55 = scmp.eq.s32.totalorder %s17, 1
      %p56 = por %p54, %p55
      %p57 = scmp.ne.s32.totalorder %s48, %s49
      %p58 = scmp.eq.s32.totalorder %s17, 0
      %p59 = por %p57, %p58
      %p60 = scmp.ne.s32.totalorder %s48, %s49
      %p61 = scmp.eq.s32.totalorder %s18, 1
      %p62 = por %p60, %p61
      %p64 = scmp.ne.s32.totalorder %s49, %s63
      %p65 = scmp.eq.s32.totalorder %s18, 0
      %p66 = por %p64, %p65
      %s68 = sadd.s32 %s67, 1
      %p71 = scmp.eq.s32.totalorder %s12, 1
      %p72 = scmp.ne.s32.totalorder %s67, %s69
      %p73 = scmp.eq.s32.totalorder %s12, 0
      %p74 = por %p72, %p73
      %p75 = scmp.ne.s32.totalorder %s67, %s69
      %p76 = scmp.eq.s32.totalorder %s17, 1
      %p77 = por %p75, %p76
      %p78 = scmp.ne.s32.totalorder %s69, %s70
      %p79 = scmp.eq.s32.totalorder %s17, 0
      %p80 = por %p78, %p79
      %p81 = scmp.ne.s32.totalorder %s69, %s70
      %p82 = scmp.eq.s32.totalorder %s18, 1
      %p83 = por %p81, %p82
      %p85 = scmp.ne.s32.totalorder %s70, %s84
      %p86 = scmp.eq.s32.totalorder %s18, 0
      %p87 = por %p85, %p86
      %s88 = ssub.s32 %s12, %s19
      %p89 = scmp.eq.s32.totalorder %s88, 0
      %s91 = sadd.s32 %s90, 1
      %s92 = scalar_select %p89, %s90, %s91
      %p95 = pneg %p89
      %p96 = scmp.eq.s32.totalorder %s12, 1
      %p97 = por %p95, %p96
      %p98 = scmp.ne.s32.totalorder %s90, %s93
      %p99 = scmp.eq.s32.totalorder %s12, 0
      %p100 = por %p98, %p99
      %p101 = scmp.ne.s32.totalorder %s90, %s93
      %p102 = scmp.eq.s32.totalorder %s17, 1
      %p103 = por %p101, %p102
      %p104 = scmp.ne.s32.totalorder %s93, %s94
      %p105 = scmp.eq.s32.totalorder %s17, 0
      %p106 = por %p104, %p105
      %p107 = scmp.ne.s32.totalorder %s93, %s94
      %p108 = scmp.eq.s32.totalorder %s18, 1
      %p109 = por %p107, %p108
      %p111 = scmp.ne.s32.totalorder %s94, %s110
      %p112 = scmp.eq.s32.totalorder %s18, 0
      %p113 = por %p111, %p112
      %p114 = scmp.le.s32.totalorder 1, %s12
      %p115 = scmp.lt.s32.totalorder %s12, 3
      %p116 = pnand %p114, %p115
      %p117 = pneg %p116
      // Predicated region
      $region9: #{encoder_forward.13} parent=5 // pred_check
        _
      $region10: #{encoder_forward.13} parent=5 // pred_check_branch
        %119 = sbr.rel (%p116) target = $region12
      $region11: #{encoder_forward.13} parent=5 // pred_region
        %s120 = ssub.s32 %s12, 1
        // Predicated region
        $region13: #{encoder_forward.13} parent=11 // pred_check
          %p121 = pneg %p59
        $region14: #{encoder_forward.13} parent=11 // pred_check_branch
          %123 = sbr.rel (%p121) target = $region16
        $region15: #{encoder_forward.13} parent=11 // pred_region
          _
        $region16: #{encoder_forward.13} parent=11 // pred_fallthru
          _
        // Predicated region
        $region17: #{encoder_forward.13} parent=11 // pred_check
          %p124 = pneg %p80
        $region18: #{encoder_forward.13} parent=11 // pred_check_branch
          %126 = sbr.rel (%p124) target = $region20
        $region19: #{encoder_forward.13} parent=11 // pred_region
          _
        $region20: #{encoder_forward.13} parent=11 // pred_fallthru
          _
      $region12: #{encoder_forward.13} parent=5 // pred_fallthru
        _
      %p127 = scmp.lt.s32.totalorder %s12, 2
      // Predicated region
      $region21: #{encoder_forward.13} parent=5 // pred_check
        %p128 = pneg %p127
      $region22: #{encoder_forward.13} parent=5 // pred_check_branch
        %130 = sbr.rel (%p128) target = $region24
      $region23: #{encoder_forward.13} parent=5 // pred_region
        // Predicated region
        $region25: #{encoder_forward.13} parent=23 // pred_check
          %p131 = pneg %p32
        $region26: #{encoder_forward.13} parent=23 // pred_check_branch
          %133 = sbr.rel (%p131) target = $region28
        $region27: #{encoder_forward.13} parent=23 // pred_region
          %p134 = scmp.lt.s32.totalorder %s12, 1
          %s135 = scalar_select %p134, %s12, 1
          %s136 = smul.addr %s135, 8
          %s137 = scalar_lea.vmem %s0, %s136
        $region28: #{encoder_forward.13} parent=23 // pred_fallthru
          _
      $region24: #{encoder_forward.13} parent=5 // pred_fallthru
        _
      %p138 = scmp.le.s32.totalorder 1, %s12
      %p139 = scmp.lt.s32.totalorder %s12, 3
      %p140 = pnand %p138, %p139
      %p141 = pneg %p140
      // Predicated region
      $region29: #{encoder_forward.13} parent=5 // pred_check
        _
      $region30: #{encoder_forward.13} parent=5 // pred_check_branch
        %143 = sbr.rel (%p140) target = $region32
      $region31: #{encoder_forward.13} parent=5 // pred_region
        %s144 = ssub.s32 %s12, 1
        %p145 = scmp.lt.s32.totalorder %s17, 1
        %s146 = scalar_select %p145, %s17, 1
        %s147 = smul.addr %s146, 8
        %s148 = scalar_lea.vmem %s0, %s147
        %p149 = pneg %p38
        %p150 = pneg %p35
        %p151 = pneg %p59
        %p152 = pneg %p56
        %p153 = pneg %p80
        %p154 = pneg %p77
        %p155 = pneg %p106
        %p156 = pneg %p103
        %s157 = sand.u32 %s93, 1
        %s158 = scalar_lea.sflag [#allocation3], %s157
        %s159 = sand.u32 %s93, 1
        %s160 = smul.addr %s159, 8
        %s161 = scalar_lea.vmem [#allocation2], %s160
        %p162 = scmp.lt.s32.totalorder %s17, 1
        %s163 = scalar_select %p162, %s17, 1
        %s164 = smul.addr %s163, 8
        %s165 = scalar_lea.vmem %s0, %s164
        %v166 = vld [vmem:[%s165] sm:$0xff]
        %v167 = vld [vmem:[%s1] sm:$0x1]
        %v168 = vld [vmem:[%s2] sm:$0x1]
        %vm169 = vcmask 261120
        %v170 = vsel %vm169, %v166, 0.0
        %171 = vadd.xlane.f32.xlu0 %v170
        %v172 = vpop.xlane.xlu0 %171
        %v173 = vrcp.pop 32.0
        %v174 = vmul.f32 %v172, %v173
        %v175 = vsub.f32 %v166, %v174
        %v176 = vmul.f32 %v175, %v175
        %v177 = vsel %vm169, %v176, 0.0
        %178 = vadd.xlane.f32.xlu0 %v177
        %v179 = vpop.xlane.xlu0 %178
        %v180 = vmul.f32 %v179, 0.032258064
        %v181 = vrsqrt.pop %v180
        %v182 = vmul.f32 %v180, %v181
        %vm183 = vcmp.eq.f32.partialorder %v180, inf
        %v184 = vsel %vm183, %v180, %v182
        %vm185 = vcmp.eq.f32.partialorder %v180, 0.0
        %v186 = vand.u32 %v180, 2147483648
        %v187 = vsel %vm185, %v186, %v184
        %v189 = vlaneseq
        %v190 = vshrl.u32 %v189, 7
        %v191 = vsub.s32 0, %v190
        %v192 = vrot.slane %v167, %v191
        %v194 = vmul.f32 %v192, %v175
        %v195 = vadd.f32 %v187, 1e-06
        %v196 = vrcp.pop %v195
        %v197 = vmul.f32 %v194, %v196
        %v199 = vlaneseq
        %v200 = vshrl.u32 %v199, 7
        %v201 = vsub.s32 0, %v200
        %v202 = vrot.slane %v168, %v201
        %v204 = vadd.f32 %v197, %v202
        %205 = vst.msk [vmem:[%s161] sm:$0xff] %vm169, %v204
        %s206 = sand.u32 %s93, 1
        %s207 = scalar_lea.sflag [#allocation3], %s206
        %s208 = sand.u32 %s93, 1
        %s209 = smul.addr %s208, 8
        %s210 = scalar_lea.vmem [#allocation2], %s209
        // Predicated region
        $region33: #{encoder_forward.13} parent=31 // pred_check
          %p211 = pneg %p103
        $region34: #{encoder_forward.13} parent=31 // pred_check_branch
          %213 = sbr.rel (%p211) target = $region36
        $region35: #{encoder_forward.13} parent=31 // pred_region
          %s215 = ssub.s32 128, 128
          %216 = vsyncadd %s207, %s215
          %s217 = smul.addr %s17, 128
          %s218 = scalar_lea.hbm %s3, %s217
          %s220 = sshll.u32 %s210, 4
          %s221 = int_to_ptr.vmem [resolvable:$true] %s220
          %223 = dma.vmem_to_hbm [thread:$0]  %s221, 128, %s218, %s207
        $region36: #{encoder_forward.13} parent=31 // pred_fallthru
          _
      $region32: #{encoder_forward.13} parent=5 // pred_fallthru
        _
      %p224 = scmp.le.s32.totalorder 2, %s12
      // Predicated region
      $region37: #{encoder_forward.13} parent=5 // pred_check
        %p225 = pneg %p224
      $region38: #{encoder_forward.13} parent=5 // pred_check_branch
        %227 = sbr.rel (%p225) target = $region40
      $region39: #{encoder_forward.13} parent=5 // pred_region
        %s228 = ssub.s32 %s12, 2
        // Predicated region
        $region41: #{encoder_forward.13} parent=39 // pred_check
          %p229 = pneg %p109
        $region42: #{encoder_forward.13} parent=39 // pred_check_branch
          %231 = sbr.rel (%p229) target = $region44
        $region43: #{encoder_forward.13} parent=39 // pred_region
          %s232 = sand.u32 %s94, 1
          %s233 = scalar_lea.sflag [#allocation3], %s232
          %s234 = sand.u32 %s94, 1
          %s235 = smul.addr %s234, 8
          %s236 = scalar_lea.vmem [#allocation2], %s235
          %237 = dma.done %s233, 128
        $region44: #{encoder_forward.13} parent=39 // pred_fallthru
          _
      $region40: #{encoder_forward.13} parent=5 // pred_fallthru
        _
    $region6: #{encoder_forward.13} parent=1 // loop_footer
      %s16 = sadd.s32 1, %s12
    $region7: #{encoder_forward.13} parent=1 // loop_footer_branch
      %11 = sbr.rel target = $region3
    $region8: #{encoder_forward.13} parent=1 // loop_exit
      _
    %238 = vsyncpa [#allocation3], 1
    %s239 = scalar_lea.sflag [#allocation3], 1
    %240 = vsyncpa %s239, 1

// kernel: encoder_forward.7
$region0: #{encoder_forward.7}
  #allocation0 [shape = 'u32[]', space=smem, size = 0x4, offset = 0x4, fixed_abs, tag = 'smem constant byte address 0x4 - core index']
  #allocation1 [shape = 'u32[144,128]{1,0:T(1,128)}', space=vmem, size = 0x12000, scoped, tag = 'internal scratch']
  %s0 = inlined_call_operand.vmem [shape: f32[16,32], index: 0, kind: input, shape index: {}]
  %s1 = inlined_call_operand.vmem [shape: f32[1,32], index: 1, kind: input, shape index: {}]
  %s2 = inlined_call_operand.vmem [shape: f32[1,32], index: 2, kind: input, shape index: {}]
  %s3 = inlined_call_operand.vmem [shape: bf16[32,96], index: 3, kind: input, shape index: {}]
  %s4 = inlined_call_operand.vmem [shape: f32[1,96], index: 4, kind: input, shape index: {}]
  %s5 = inlined_call_operand.vmem [shape: bf16[16,96], index: 5, kind: output, shape index: {}]
  %s6 = sld [smem:[#allocation0]]
  $region53: #{encoder_forward.7} parent=0
    _
  %s8 = ssub.s32 1, %s6
  %s9 = scalar_select 0, %s8, %s6
  loop: start=0, step=1, limit=4
  $region2: #{encoder_forward.7} parent=0 // loop_pre_header
    _
  $region3: #{encoder_forward.7} parent=0 // loop_header
    %s11 = sphi 0, %s15
    %p12 = scmp.ge.s32.totalorder %s11, 4
    %s21 = sphi 0, %s23
    %s24 = sphi 0, %s21
    %s25 = sphi 0, %s24
    %s41 = sphi 0, %s25
    %s45 = sphi 0, %s45
    %s47 = sphi 0, %s45
    %s48 = sphi 0, %s47
    %s62 = sphi 0, %s48
    %s66 = sphi 0, %s66
    %s68 = sphi 0, %s66
    %s69 = sphi 0, %s68
    %s83 = sphi 0, %s69
    %s87 = sphi 0, %s87
    %s89 = sphi 0, %s87
    %s90 = sphi 0, %s89
    %s104 = sphi 0, %s90
    %s108 = sphi 0, %s108
    %s110 = sphi 0, %s108
    %s111 = sphi 0, %s110
    %s125 = sphi 0, %s111
    %s131 = sphi 0, %s133
    %s134 = sphi 0, %s131
    %s135 = sphi 0, %s134
    %s151 = sphi 0, %s135
  $region4: #{encoder_forward.7} parent=0 // loop_header_branch
    %14 = sbr.rel (%p12) target = $region8
  $region5: #{encoder_forward.7} parent=0 // loop_body
    %s16 = ssub.s32 %s11, 1
    %s17 = ssub.s32 %s11, 2
    %s18 = sadd.s32 %s11, 1
    %s19 = ssub.s32 %s11, %s18
    %p20 = scmp.eq.s32.totalorder %s19, 0
    %s22 = sadd.s32 %s21, 1
    %s23 = scalar_select %p20, %s21, %s22
    %p26 = pneg %p20
    %p27 = scmp.eq.s32.totalorder %s11, 1
    %p28 = por %p26, %p27
    %p29 = scmp.ne.s32.totalorder %s21, %s24
    %p30 = scmp.eq.s32.totalorder %s11, 0
    %p31 = por %p29, %p30
    %p32 = scmp.ne.s32.totalorder %s21, %s24
    %p33 = scmp.eq.s32.totalorder %s16, 1
    %p34 = por %p32, %p33
    %p35 = scmp.ne.s32.totalorder %s24, %s25
    %p36 = scmp.eq.s32.totalorder %s16, 0
    %p37 = por %p35, %p36
    %p38 = scmp.ne.s32.totalorder %s24, %s25
    %p39 = scmp.eq.s32.totalorder %s17, 1
    %p40 = por %p38, %p39
    %p42 = scmp.ne.s32.totalorder %s25, %s41
    %p43 = scmp.eq.s32.totalorder %s17, 0
    %p44 = por %p42, %p43
    %s46 = sadd.s32 %s45, 1
    %p49 = scmp.eq.s32.totalorder %s11, 1
    %p50 = scmp.ne.s32.totalorder %s45, %s47
    %p51 = scmp.eq.s32.totalorder %s11, 0
    %p52 = por %p50, %p51
    %p53 = scmp.ne.s32.totalorder %s45, %s47
    %p54 = scmp.eq.s32.totalorder %s16, 1
    %p55 = por %p53, %p54
    %p56 = scmp.ne.s32.totalorder %s47, %s48
    %p57 = scmp.eq.s32.totalorder %s16, 0
    %p58 = por %p56, %p57
    %p59 = scmp.ne.s32.totalorder %s47, %s48
    %p60 = scmp.eq.s32.totalorder %s17, 1
    %p61 = por %p59, %p60
    %p63 = scmp.ne.s32.totalorder %s48, %s62
    %p64 = scmp.eq.s32.totalorder %s17, 0
    %p65 = por %p63, %p64
    %s67 = sadd.s32 %s66, 1
    %p70 = scmp.eq.s32.totalorder %s11, 1
    %p71 = scmp.ne.s32.totalorder %s66, %s68
    %p72 = scmp.eq.s32.totalorder %s11, 0
    %p73 = por %p71, %p72
    %p74 = scmp.ne.s32.totalorder %s66, %s68
    %p75 = scmp.eq.s32.totalorder %s16, 1
    %p76 = por %p74, %p75
    %p77 = scmp.ne.s32.totalorder %s68, %s69
    %p78 = scmp.eq.s32.totalorder %s16, 0
    %p79 = por %p77, %p78
    %p80 = scmp.ne.s32.totalorder %s68, %s69
    %p81 = scmp.eq.s32.totalorder %s17, 1
    %p82 = por %p80, %p81
    %p84 = scmp.ne.s32.totalorder %s69, %s83
    %p85 = scmp.eq.s32.totalorder %s17, 0
    %p86 = por %p84, %p85
    %s88 = sadd.s32 %s87, 1
    %p91 = scmp.eq.s32.totalorder %s11, 1
    %p92 = scmp.ne.s32.totalorder %s87, %s89
    %p93 = scmp.eq.s32.totalorder %s11, 0
    %p94 = por %p92, %p93
    %p95 = scmp.ne.s32.totalorder %s87, %s89
    %p96 = scmp.eq.s32.totalorder %s16, 1
    %p97 = por %p95, %p96
    %p98 = scmp.ne.s32.totalorder %s89, %s90
    %p99 = scmp.eq.s32.totalorder %s16, 0
    %p100 = por %p98, %p99
    %p101 = scmp.ne.s32.totalorder %s89, %s90
    %p102 = scmp.eq.s32.totalorder %s17, 1
    %p103 = por %p101, %p102
    %p105 = scmp.ne.s32.totalorder %s90, %s104
    %p106 = scmp.eq.s32.totalorder %s17, 0
    %p107 = por %p105, %p106
    %s109 = sadd.s32 %s108, 1
    %p112 = scmp.eq.s32.totalorder %s11, 1
    %p113 = scmp.ne.s32.totalorder %s108, %s110
    %p114 = scmp.eq.s32.totalorder %s11, 0
    %p115 = por %p113, %p114
    %p116 = scmp.ne.s32.totalorder %s108, %s110
    %p117 = scmp.eq.s32.totalorder %s16, 1
    %p118 = por %p116, %p117
    %p119 = scmp.ne.s32.totalorder %s110, %s111
    %p120 = scmp.eq.s32.totalorder %s16, 0
    %p121 = por %p119, %p120
    %p122 = scmp.ne.s32.totalorder %s110, %s111
    %p123 = scmp.eq.s32.totalorder %s17, 1
    %p124 = por %p122, %p123
    %p126 = scmp.ne.s32.totalorder %s111, %s125
    %p127 = scmp.eq.s32.totalorder %s17, 0
    %p128 = por %p126, %p127
    %s129 = ssub.s32 %s11, %s18
    %p130 = scmp.eq.s32.totalorder %s129, 0
    %s132 = sadd.s32 %s131, 1
    %s133 = scalar_select %p130, %s131, %s132
    %p136 = pneg %p130
    %p137 = scmp.eq.s32.totalorder %s11, 1
    %p138 = por %p136, %p137
    %p139 = scmp.ne.s32.totalorder %s131, %s134
    %p140 = scmp.eq.s32.totalorder %s11, 0
    %p141 = por %p139, %p140
    %p142 = scmp.ne.s32.totalorder %s131, %s134
    %p143 = scmp.eq.s32.totalorder %s16, 1
    %p144 = por %p142, %p143
    %p145 = scmp.ne.s32.totalorder %s134, %s135
    %p146 = scmp.eq.s32.totalorder %s16, 0
    %p147 = por %p145, %p146
    %p148 = scmp.ne.s32.totalorder %s134, %s135
    %p149 = scmp.eq.s32.totalorder %s17, 1
    %p150 = por %p148, %p149
    %p152 = scmp.ne.s32.totalorder %s135, %s151
    %p153 = scmp.eq.s32.totalorder %s17, 0
    %p154 = por %p152, %p153
    %p155 = scmp.le.s32.totalorder 1, %s11
    %p156 = scmp.lt.s32.totalorder %s11, 3
    %p157 = pnand %p155, %p156
    %p158 = pneg %p157
    // Predicated region
    $region9: #{encoder_forward.7} parent=5 // pred_check
      _
    $region10: #{encoder_forward.7} parent=5 // pred_check_branch
      %160 = sbr.rel (%p157) target = $region12
    $region11: #{encoder_forward.7} parent=5 // pred_region
      %s161 = ssub.s32 %s11, 1
      // Predicated region
      $region13: #{encoder_forward.7} parent=11 // pred_check
        %p162 = pneg %p58
      $region14: #{encoder_forward.7} parent=11 // pred_check_branch
        %164 = sbr.rel (%p162) target = $region16
      $region15: #{encoder_forward.7} parent=11 // pred_region
        _
      $region16: #{encoder_forward.7} parent=11 // pred_fallthru
        _
      // Predicated region
      $region17: #{encoder_forward.7} parent=11 // pred_check
        %p165 = pneg %p79
      $region18: #{encoder_forward.7} parent=11 // pred_check_branch
        %167 = sbr.rel (%p165) target = $region20
      $region19: #{encoder_forward.7} parent=11 // pred_region
        _
      $region20: #{encoder_forward.7} parent=11 // pred_fallthru
        _
      // Predicated region
      $region21: #{encoder_forward.7} parent=11 // pred_check
        %p168 = pneg %p100
      $region22: #{encoder_forward.7} parent=11 // pred_check_branch
        %170 = sbr.rel (%p168) target = $region24
      $region23: #{encoder_forward.7} parent=11 // pred_region
        _
      $region24: #{encoder_forward.7} parent=11 // pred_fallthru
        _
      // Predicated region
      $region25: #{encoder_forward.7} parent=11 // pred_check
        %p171 = pneg %p121
      $region26: #{encoder_forward.7} parent=11 // pred_check_branch
        %173 = sbr.rel (%p171) target = $region28
      $region27: #{encoder_forward.7} parent=11 // pred_region
        _
      $region28: #{encoder_forward.7} parent=11 // pred_fallthru
        _
    $region12: #{encoder_forward.7} parent=5 // pred_fallthru
      _
    %p174 = scmp.lt.s32.totalorder %s11, 2
    // Predicated region
    $region29: #{encoder_forward.7} parent=5 // pred_check
      %p175 = pneg %p174
    $region30: #{encoder_forward.7} parent=5 // pred_check_branch
      %177 = sbr.rel (%p175) target = $region32
    $region31: #{encoder_forward.7} parent=5 // pred_region
      // Predicated region
      $region33: #{encoder_forward.7} parent=31 // pred_check
        %p178 = pneg %p31
      $region34: #{encoder_forward.7} parent=31 // pred_check_branch
        %180 = sbr.rel (%p178) target = $region36
      $region35: #{encoder_forward.7} parent=31 // pred_region
        %p181 = scmp.lt.s32.totalorder %s11, 1
        %s182 = scalar_select %p181, %s11, 1
        %s183 = smul.addr %s182, 8
        %s184 = scalar_lea.vmem %s0, %s183
      $region36: #{encoder_forward.7} parent=31 // pred_fallthru
        _
    $region32: #{encoder_forward.7} parent=5 // pred_fallthru
      _
    %p185 = scmp.le.s32.totalorder 1, %s11
    %p186 = scmp.lt.s32.totalorder %s11, 3
    %p187 = pnand %p185, %p186
    %p188 = pneg %p187
    // Predicated region
    $region37: #{encoder_forward.7} parent=5 // pred_check
      _
    $region38: #{encoder_forward.7} parent=5 // pred_check_branch
      %190 = sbr.rel (%p187) target = $region40
    $region39: #{encoder_forward.7} parent=5 // pred_region
      %s191 = ssub.s32 %s11, 1
      %p192 = scmp.lt.s32.totalorder %s16, 1
      %s193 = scalar_select %p192, %s16, 1
      %s194 = smul.addr %s193, 8
      %s195 = scalar_lea.vmem %s0, %s194
      %p196 = pneg %p37
      %p197 = pneg %p34
      %p198 = pneg %p58
      %p199 = pneg %p55
      %p200 = pneg %p79
      %p201 = pneg %p76
      %p202 = pneg %p100
      %p203 = pneg %p97
      %p204 = pneg %p121
      %p205 = pneg %p118
      %p206 = pneg %p147
      %p207 = pneg %p144
      %p208 = scmp.lt.s32.totalorder %s16, 1
      %s209 = scalar_select %p208, %s16, 1
      %s210 = smul.addr %s209, 4
      %s211 = scalar_lea.vmem %s5, %s210
      %p212 = scmp.lt.s32.totalorder %s16, 1
      %s213 = scalar_select %p212, %s16, 1
      %s214 = smul.addr %s213, 8
      %s215 = scalar_lea.vmem %s0, %s214
      %p216 = scmp.lt.s32.totalorder %s16, 1
      %s217 = scalar_select %p216, %s16, 1
      %s218 = smul.addr %s217, 4
      %s219 = scalar_lea.vmem %s5, %s218
      %v221 = vld [vmem:[%s215] sm:$0xff]
      %v222 = vld [vmem:[%s1] sm:$0x1]
      %v223 = vld [vmem:[%s2] sm:$0x1]
      %vm224 = vcmask 261120
      %v225 = vsel %vm224, %v221, 0.0
      %226 = vadd.xlane.f32.xlu0 %v225
      %v227 = vpop.xlane.xlu0 %226
      %v228 = vrcp.pop 32.0
      %v229 = vmul.f32 %v227, %v228
      %v230 = vsub.f32 %v221, %v229
      %v231 = vmul.f32 %v230, %v230
      %v232 = vsel %vm224, %v231, 0.0
      %233 = vadd.xlane.f32.xlu0 %v232
      %v234 = vpop.xlane.xlu0 %233
      %v235 = vmul.f32 %v234, 0.032258064
      %v236 = vrsqrt.pop %v235
      %v237 = vmul.f32 %v235, %v236
      %vm238 = vcmp.eq.f32.partialorder %v235, inf
      %v239 = vsel %vm238, %v235, %v237
      %vm240 = vcmp.eq.f32.partialorder %v235, 0.0
      %v241 = vand.u32 %v235, 2147483648
      %v242 = vsel %vm240, %v241, %v239
      %v244 = vlaneseq
      %v245 = vshrl.u32 %v244, 7
      %v246 = vsub.s32 0, %v245
      %v247 = vrot.slane %v222, %v246
      %v249 = vmul.f32 %v247, %v230
      %v250 = vadd.f32 %v242, 1e-06
      %v251 = vrcp.pop %v250
      %v252 = vmul.f32 %v249, %v251
      %v254 = vlaneseq
      %v255 = vshrl.u32 %v254, 7
      %v256 = vsub.s32 0, %v255
      %v257 = vrot.slane %v223, %v256
      %v259 = vadd.f32 %v252, %v257
      %v260 = vpack.c.bf16 %v259, %v259
      %v261 = vld [vmem:[%s3] sm:$0xf]
      %v262 = vld [vmem:[%s3 + $0x4] sm:$0xf]
      %v263 = vld [vmem:[%s3 + $0x8] sm:$0xf]
      %v264 = vld [vmem:[%s3 + $0xc] sm:$0xf]
      %v265 = vld [vmem:[%s4] sm:$0x1]
      %v267 = vlaneseq
      %v268 = vshrl.u32 %v267, 7
      %v269 = vsub.s32 0, %v268
      %v270 = vrot.slane %v265, %v269
      %v276 = vunpack.c.l.b16 %v261
      %v277 = vunpack.c.l.b16 %v262
      %v278 = vunpack.c.l.b16 %v263
      %v279 = vunpack.c.l.b16 %v264
      %v280 = vpack.c.b16 %v277, %v276
      %v281 = vpack.c.b16 %v279, %v278
      %v285 = vsel %vm224, %v260, 0
      %287 = vmatprep.subr.bf16.mxu0 0
      %288 = vmatpush1.bf16.msra.mxu0 %v280
      %289 = vmatprep.subr.bf16.mxu0 0
      %290 = vmatpush1.bf16.msra.mxu0 %v281
      %291 = vmatprep.subr.bf16.mxu0 0
      %292 = vmatpush1.bf16.msra.mxu0 0
      %293 = vmatprep.subr.bf16.mxu0 0
      %294 = vmatpush1.bf16.msra.mxu0 0
      %295 = vmatprep.subr.bf16.mxu0 0
      %296 = vmatpush1.bf16.msra.mxu0 0
      %297 = vmatprep.subr.bf16.mxu0 0
      %298 = vmatpush1.bf16.msra.mxu0 0
      %299 = vmatprep.subr.bf16.mxu0 0
      %300 = vmatpush1.bf16.msra.mxu0 0
      %301 = vmatprep.subr.bf16.mxu0 0
      %302 = vmatpush1.bf16.msra.mxu0 0
      %303 = vmatprep.subr.bf16.mxu0 0
      %304 = vmatpush1.bf16.msra.mxu0 0
      %305 = vmatprep.subr.bf16.mxu0 0
      %306 = vmatpush1.bf16.msra.mxu0 0
      %307 = vmatprep.subr.bf16.mxu0 0
      %308 = vmatpush1.bf16.msra.mxu0 0
      %309 = vmatprep.subr.bf16.mxu0 0
      %310 = vmatpush1.bf16.msra.mxu0 0
      %311 = vmatprep.subr.bf16.mxu0 0
      %312 = vmatpush1.bf16.msra.mxu0 0
      %313 = vmatprep.subr.bf16.mxu0 0
      %314 = vmatpush1.bf16.msra.mxu0 0
      %315 = vmatprep.subr.bf16.mxu0 0
      %316 = vmatpush1.bf16.msra.mxu0 0
      %317 = vmatprep.subr.bf16.mxu0 0
      %318 = vmatpush1.bf16.msra.mxu0 0
      %319 = vmatprep.mubr.bf16.mxu0 0
      %320 = vmatmul.mubr.bf16.gmra.mrb[0].mxu0 %v285
      %v321 = vpop.f32.mrb[0].mxu0
      %v322 = vadd.f32 %v270, %v321
      %v323 = vpop.f32.mrb[0].mxu0
      %v324 = vpop.f32.mrb[0].mxu0
      %v325 = vpop.f32.mrb[0].mxu0
      %326 = vdwg.mxu0
      %v327 = vpack.c.bf16 %v322, %v322
      %vm328 = vcmask 781312
      %329 = vst.msk [vmem:[%s219] sm:$0xf] %vm328, %v327
      %p330 = scmp.lt.s32.totalorder %s16, 1
      %s331 = scalar_select %p330, %s16, 1
      %s332 = smul.addr %s331, 4
      %s333 = scalar_lea.vmem %s5, %s332
      // Predicated region
      $region41: #{encoder_forward.7} parent=39 // pred_check
        %p334 = pneg %p144
      $region42: #{encoder_forward.7} parent=39 // pred_check_branch
        %336 = sbr.rel (%p334) target = $region44
      $region43: #{encoder_forward.7} parent=39 // pred_region
        _
      $region44: #{encoder_forward.7} parent=39 // pred_fallthru
        _
    $region40: #{encoder_forward.7} parent=5 // pred_fallthru
      _
    %p337 = scmp.le.s32.totalorder 2, %s11
    // Predicated region
    $region45: #{encoder_forward.7} parent=5 // pred_check
      %p338 = pneg %p337
    $region46: #{encoder_forward.7} parent=5 // pred_check_branch
      %340 = sbr.rel (%p338) target = $region48
    $region47: #{encoder_forward.7} parent=5 // pred_region
      %s341 = ssub.s32 %s11, 2
      // Predicated region
      $region49: #{encoder_forward.7} parent=47 // pred_check
        %p342 = pneg %p150
      $region50: #{encoder_forward.7} parent=47 // pred_check_branch
        %344 = sbr.rel (%p342) target = $region52
      $region51: #{encoder_forward.7} parent=47 // pred_region
        %p345 = scmp.lt.s32.totalorder %s17, 1
        %s346 = scalar_select %p345, %s17, 1
        %s347 = smul.addr %s346, 4
        %s348 = scalar_lea.vmem %s5, %s347
      $region52: #{encoder_forward.7} parent=47 // pred_fallthru
        _
    $region48: #{encoder_forward.7} parent=5 // pred_fallthru
      _
  $region6: #{encoder_forward.7} parent=0 // loop_footer
    %s15 = sadd.s32 1, %s11
  $region7: #{encoder_forward.7} parent=0 // loop_footer_branch
    %10 = sbr.rel target = $region3
  $region8: #{encoder_forward.7} parent=0 // loop_exit
    _

// kernel: encoder_forward.9
$region0: #{encoder_forward.9}
  #allocation0 [shape = 'u32[]', space=smem, size = 0x4, offset = 0x4, fixed_abs, tag = 'smem constant byte address 0x4 - core index']
  #allocation1 [shape = 'u32[144,128]{1,0:T(1,128)}', space=vmem, size = 0x12000, scoped, tag = 'internal scratch']
  #allocation2 [shape = 'bf16[8,32]{1,0:T(8,128)(2,1)}', space=vmem, size = 0x800, scoped, tag = 'scratch operand']
  #allocation3 [shape = 'f32[8,32]{1,0:T(8,128)}', space=vmem, size = 0x1000, scoped, tag = 'scratch operand']
  %s0 = inlined_call_operand.vmem [shape: f32[16,32], index: 0, kind: input, shape index: {}, may-alias: {0,7}]
  %s1 = inlined_call_operand.vmem [shape: f32[1,32], index: 1, kind: input, shape index: {}]
  %s2 = inlined_call_operand.vmem [shape: f32[1,32], index: 2, kind: input, shape index: {}]
  %s3 = inlined_call_operand.vmem [shape: bf16[32,64], index: 3, kind: input, shape index: {}]
  %s4 = inlined_call_operand.vmem [shape: f32[1,64], index: 4, kind: input, shape index: {}]
  %s5 = inlined_call_operand.vmem [shape: bf16[64,32], index: 5, kind: input, shape index: {}]
  %s6 = inlined_call_operand.vmem [shape: f32[1,32], index: 6, kind: input, shape index: {}]
  %s7 = inlined_call_operand.vmem [shape: f32[16,32], index: 7, kind: output, shape index: {}, may-alias: {0,7}]
  %s8 = sld [smem:[#allocation0]]
  $region69: #{encoder_forward.9} parent=0
    _
  %s10 = ssub.s32 1, %s8
  %s11 = scalar_select 0, %s10, %s8
  loop: start=0, step=1, limit=4
  $region2: #{encoder_forward.9} parent=0 // loop_pre_header
    _
  $region3: #{encoder_forward.9} parent=0 // loop_header
    %s13 = sphi 0, %s17
    %p14 = scmp.ge.s32.totalorder %s13, 4
    %s20 = sphi 0, %s32
    %s21 = sphi 0, %s28
    %s22 = sphi 0, %s20
    %s23 = sphi 0, %s21
    %s24 = sphi 0, %s22
    %s25 = sphi 0, %s23
    %s35 = sphi 0, %s37
    %s38 = sphi 0, %s35
    %s39 = sphi 0, %s38
    %s55 = sphi 0, %s39
    %s59 = sphi 0, %s59
    %s61 = sphi 0, %s59
    %s62 = sphi 0, %s61
    %s76 = sphi 0, %s62
    %s80 = sphi 0, %s80
    %s82 = sphi 0, %s80
    %s83 = sphi 0, %s82
    %s97 = sphi 0, %s83
    %s103 = sphi 0, %s105
    %s106 = sphi 0, %s103
    %s107 = sphi 0, %s106
    %s123 = sphi 0, %s107
    %s129 = sphi 0, %s131
    %s132 = sphi 0, %s129
    %s133 = sphi 0, %s132
    %s149 = sphi 0, %s133
    %s155 = sphi 0, %s157
    %s158 = sphi 0, %s155
    %s159 = sphi 0, %s158
    %s175 = sphi 0, %s159
    %s179 = sphi 0, %s179
    %s181 = sphi 0, %s179
    %s182 = sphi 0, %s181
    %s196 = sphi 0, %s182
    %s202 = sphi 0, %s204
    %s205 = sphi 0, %s202
    %s206 = sphi 0, %s205
    %s222 = sphi 0, %s206
  $region4: #{encoder_forward.9} parent=0 // loop_header_branch
    %16 = sbr.rel (%p14) target = $region8
  $region5: #{encoder_forward.9} parent=0 // loop_body
    %s18 = ssub.s32 %s13, 1
    %s19 = ssub.s32 %s13, 2
    %s26 = sadd.s32 1, %s21
    %p27 = scmp.ge.s32.totalorder %s26, 1
    %s28 = scalar_select %p27, 0, %s26
    %s29 = sadd.s32 1, %s20
    %s30 = scalar_select %p27, %s29, %s20
    %p31 = scmp.ge.s32.totalorder %s30, 2
    %s32 = scalar_select %p31, 0, %s30
    %s33 = ssub.s32 %s20, %s32
    %p34 = scmp.eq.s32.totalorder %s33, 0
    %s36 = sadd.s32 %s35, 1
    %s37 = scalar_select %p34, %s35, %s36
    %p40 = pneg %p34
    %p41 = scmp.eq.s32.totalorder %s13, 1
    %p42 = por %p40, %p41
    %p43 = scmp.ne.s32.totalorder %s35, %s38
    %p44 = scmp.eq.s32.totalorder %s13, 0
    %p45 = por %p43, %p44
    %p46 = scmp.ne.s32.totalorder %s35, %s38
    %p47 = scmp.eq.s32.totalorder %s18, 1
    %p48 = por %p46, %p47
    %p49 = scmp.ne.s32.totalorder %s38, %s39
    %p50 = scmp.eq.s32.totalorder %s18, 0
    %p51 = por %p49, %p50
    %p52 = scmp.ne.s32.totalorder %s38, %s39
    %p53 = scmp.eq.s32.totalorder %s19, 1
    %p54 = por %p52, %p53
    %p56 = scmp.ne.s32.totalorder %s39, %s55
    %p57 = scmp.eq.s32.totalorder %s19, 0
    %p58 = por %p56, %p57
    %s60 = sadd.s32 %s59, 1
    %p63 = scmp.eq.s32.totalorder %s13, 1
    %p64 = scmp.ne.s32.totalorder %s59, %s61
    %p65 = scmp.eq.s32.totalorder %s13, 0
    %p66 = por %p64, %p65
    %p67 = scmp.ne.s32.totalorder %s59, %s61
    %p68 = scmp.eq.s32.totalorder %s18, 1
    %p69 = por %p67, %p68
    %p70 = scmp.ne.s32.totalorder %s61, %s62
    %p71 = scmp.eq.s32.totalorder %s18, 0
    %p72 = por %p70, %p71
    %p73 = scmp.ne.s32.totalorder %s61, %s62
    %p74 = scmp.eq.s32.totalorder %s19, 1
    %p75 = por %p73, %p74
    %p77 = scmp.ne.s32.totalorder %s62, %s76
    %p78 = scmp.eq.s32.totalorder %s19, 0
    %p79 = por %p77, %p78
    %s81 = sadd.s32 %s80, 1
    %p84 = scmp.eq.s32.totalorder %s13, 1
    %p85 = scmp.ne.s32.totalorder %s80, %s82
    %p86 = scmp.eq.s32.totalorder %s13, 0
    %p87 = por %p85, %p86
    %p88 = scmp.ne.s32.totalorder %s80, %s82
    %p89 = scmp.eq.s32.totalorder %s18, 1
    %p90 = por %p88, %p89
    %p91 = scmp.ne.s32.totalorder %s82, %s83
    %p92 = scmp.eq.s32.totalorder %s18, 0
    %p93 = por %p91, %p92
    %p94 = scmp.ne.s32.totalorder %s82, %s83
    %p95 = scmp.eq.s32.totalorder %s19, 1
    %p96 = por %p94, %p95
    %p98 = scmp.ne.s32.totalorder %s83, %s97
    %p99 = scmp.eq.s32.totalorder %s19, 0
    %p100 = por %p98, %p99
    %s101 = ssub.s32 %s21, %s28
    %p102 = scmp.eq.s32.totalorder %s101, 0
    %s104 = sadd.s32 %s103, 1
    %s105 = scalar_select %p102, %s103, %s104
    %p108 = pneg %p102
    %p109 = scmp.eq.s32.totalorder %s13, 1
    %p110 = por %p108, %p109
    %p111 = scmp.ne.s32.totalorder %s103, %s106
    %p112 = scmp.eq.s32.totalorder %s13, 0
    %p113 = por %p111, %p112
    %p114 = scmp.ne.s32.totalorder %s103, %s106
    %p115 = scmp.eq.s32.totalorder %s18, 1
    %p116 = por %p114, %p115
    %p117 = scmp.ne.s32.totalorder %s106, %s107
    %p118 = scmp.eq.s32.totalorder %s18, 0
    %p119 = por %p117, %p118
    %p120 = scmp.ne.s32.totalorder %s106, %s107
    %p121 = scmp.eq.s32.totalorder %s19, 1
    %p122 = por %p120, %p121
    %p124 = scmp.ne.s32.totalorder %s107, %s123
    %p125 = scmp.eq.s32.totalorder %s19, 0
    %p126 = por %p124, %p125
    %s127 = ssub.s32 %s21, %s28
    %p128 = scmp.eq.s32.totalorder %s127, 0
    %s130 = sadd.s32 %s129, 1
    %s131 = scalar_select %p128, %s129, %s130
    %p134 = pneg %p128
    %p135 = scmp.eq.s32.totalorder %s13, 1
    %p136 = por %p134, %p135
    %p137 = scmp.ne.s32.totalorder %s129, %s132
    %p138 = scmp.eq.s32.totalorder %s13, 0
    %p139 = por %p137, %p138
    %p140 = scmp.ne.s32.totalorder %s129, %s132
    %p141 = scmp.eq.s32.totalorder %s18, 1
    %p142 = por %p140, %p141
    %p143 = scmp.ne.s32.totalorder %s132, %s133
    %p144 = scmp.eq.s32.totalorder %s18, 0
    %p145 = por %p143, %p144
    %p146 = scmp.ne.s32.totalorder %s132, %s133
    %p147 = scmp.eq.s32.totalorder %s19, 1
    %p148 = por %p146, %p147
    %p150 = scmp.ne.s32.totalorder %s133, %s149
    %p151 = scmp.eq.s32.totalorder %s19, 0
    %p152 = por %p150, %p151
    %s153 = ssub.s32 %s21, %s28
    %p154 = scmp.eq.s32.totalorder %s153, 0
    %s156 = sadd.s32 %s155, 1
    %s157 = scalar_select %p154, %s155, %s156
    %p160 = pneg %p154
    %p161 = scmp.eq.s32.totalorder %s13, 1
    %p162 = por %p160, %p161
    %p163 = scmp.ne.s32.totalorder %s155, %s158
    %p164 = scmp.eq.s32.totalorder %s13, 0
    %p165 = por %p163, %p164
    %p166 = scmp.ne.s32.totalorder %s155, %s158
    %p167 = scmp.eq.s32.totalorder %s18, 1
    %p168 = por %p166, %p167
    %p169 = scmp.ne.s32.totalorder %s158, %s159
    %p170 = scmp.eq.s32.totalorder %s18, 0
    %p171 = por %p169, %p170
    %p172 = scmp.ne.s32.totalorder %s158, %s159
    %p173 = scmp.eq.s32.totalorder %s19, 1
    %p174 = por %p172, %p173
    %p176 = scmp.ne.s32.totalorder %s159, %s175
    %p177 = scmp.eq.s32.totalorder %s19, 0
    %p178 = por %p176, %p177
    %s180 = sadd.s32 %s179, 1
    %p183 = scmp.eq.s32.totalorder %s13, 1
    %p184 = scmp.ne.s32.totalorder %s179, %s181
    %p185 = scmp.eq.s32.totalorder %s13, 0
    %p186 = por %p184, %p185
    %p187 = scmp.ne.s32.totalorder %s179, %s181
    %p188 = scmp.eq.s32.totalorder %s18, 1
    %p189 = por %p187, %p188
    %p190 = scmp.ne.s32.totalorder %s181, %s182
    %p191 = scmp.eq.s32.totalorder %s18, 0
    %p192 = por %p190, %p191
    %p193 = scmp.ne.s32.totalorder %s181, %s182
    %p194 = scmp.eq.s32.totalorder %s19, 1
    %p195 = por %p193, %p194
    %p197 = scmp.ne.s32.totalorder %s182, %s196
    %p198 = scmp.eq.s32.totalorder %s19, 0
    %p199 = por %p197, %p198
    %s200 = ssub.s32 %s20, %s32
    %p201 = scmp.eq.s32.totalorder %s200, 0
    %s203 = sadd.s32 %s202, 1
    %s204 = scalar_select %p201, %s202, %s203
    %p207 = pneg %p201
    %p208 = scmp.eq.s32.totalorder %s13, 1
    %p209 = por %p207, %p208
    %p210 = scmp.ne.s32.totalorder %s202, %s205
    %p211 = scmp.eq.s32.totalorder %s13, 0
    %p212 = por %p210, %p211
    %p213 = scmp.ne.s32.totalorder %s202, %s205
    %p214 = scmp.eq.s32.totalorder %s18, 1
    %p215 = por %p213, %p214
    %p216 = scmp.ne.s32.totalorder %s205, %s206
    %p217 = scmp.eq.s32.totalorder %s18, 0
    %p218 = por %p216, %p217
    %p219 = scmp.ne.s32.totalorder %s205, %s206
    %p220 = scmp.eq.s32.totalorder %s19, 1
    %p221 = por %p219, %p220
    %p223 = scmp.ne.s32.totalorder %s206, %s222
    %p224 = scmp.eq.s32.totalorder %s19, 0
    %p225 = por %p223, %p224
    %p226 = scmp.le.s32.totalorder 1, %s13
    %p227 = scmp.lt.s32.totalorder %s13, 3
    %p228 = pnand %p226, %p227
    %p229 = pneg %p228
    // Predicated region
    $region9: #{encoder_forward.9} parent=5 // pred_check
      _
    $region10: #{encoder_forward.9} parent=5 // pred_check_branch
      %231 = sbr.rel (%p228) target = $region12
    $region11: #{encoder_forward.9} parent=5 // pred_region
      %s232 = ssub.s32 %s13, 1
      // Predicated region
      $region13: #{encoder_forward.9} parent=11 // pred_check
        %p233 = pneg %p72
      $region14: #{encoder_forward.9} parent=11 // pred_check_branch
        %235 = sbr.rel (%p233) target = $region16
      $region15: #{encoder_forward.9} parent=11 // pred_region
        _
      $region16: #{encoder_forward.9} parent=11 // pred_fallthru
        _
      // Predicated region
      $region17: #{encoder_forward.9} parent=11 // pred_check
        %p236 = pneg %p93
      $region18: #{encoder_forward.9} parent=11 // pred_check_branch
        %238 = sbr.rel (%p236) target = $region20
      $region19: #{encoder_forward.9} parent=11 // pred_region
        _
      $region20: #{encoder_forward.9} parent=11 // pred_fallthru
        _
      // Predicated region
      $region21: #{encoder_forward.9} parent=11 // pred_check
        %p239 = pneg %p119
      $region22: #{encoder_forward.9} parent=11 // pred_check_branch
        %241 = sbr.rel (%p239) target = $region24
      $region23: #{encoder_forward.9} parent=11 // pred_region
        %p242 = scmp.lt.s32.totalorder %s23, 0
        %s243 = scalar_select %p242, %s23, 0
        %s244 = smul.addr %s243, 4
        %s245 = scalar_lea.vmem %s3, %s244
      $region24: #{encoder_forward.9} parent=11 // pred_fallthru
        _
      // Predicated region
      $region25: #{encoder_forward.9} parent=11 // pred_check
        %p246 = pneg %p145
      $region26: #{encoder_forward.9} parent=11 // pred_check_branch
        %248 = sbr.rel (%p246) target = $region28
      $region27: #{encoder_forward.9} parent=11 // pred_region
        %p249 = scmp.lt.s32.totalorder %s23, 0
        %s250 = scalar_select %p249, %s23, 0
        %s251 = scalar_lea.vmem %s4, %s250
      $region28: #{encoder_forward.9} parent=11 // pred_fallthru
        _
      // Predicated region
      $region29: #{encoder_forward.9} parent=11 // pred_check
        %p252 = pneg %p171
      $region30: #{encoder_forward.9} parent=11 // pred_check_branch
        %254 = sbr.rel (%p252) target = $region32
      $region31: #{encoder_forward.9} parent=11 // pred_region
        %s255 = smul.u32 8, %s23
        %p256 = scmp.lt.s32.totalorder %s255, 7
        %s257 = scalar_select %p256, %s255, 7
        %s258 = smul.addr %s257, 4
        %s259 = scalar_lea.vmem %s5, %s258
        %s260 = smul.u32 8, %s23
      $region32: #{encoder_forward.9} parent=11 // pred_fallthru
        _
      // Predicated region
      $region33: #{encoder_forward.9} parent=11 // pred_check
        %p261 = pneg %p192
      $region34: #{encoder_forward.9} parent=11 // pred_check_branch
        %263 = sbr.rel (%p261) target = $region36
      $region35: #{encoder_forward.9} parent=11 // pred_region
        _
      $region36: #{encoder_forward.9} parent=11 // pred_fallthru
        _
    $region12: #{encoder_forward.9} parent=5 // pred_fallthru
      _
    %p264 = scmp.lt.s32.totalorder %s13, 2
    // Predicated region
    $region37: #{encoder_forward.9} parent=5 // pred_check
      %p265 = pneg %p264
    $region38: #{encoder_forward.9} parent=5 // pred_check_branch
      %267 = sbr.rel (%p265) target = $region40
    $region39: #{encoder_forward.9} parent=5 // pred_region
      // Predicated region
      $region41: #{encoder_forward.9} parent=39 // pred_check
        %p268 = pneg %p45
      $region42: #{encoder_forward.9} parent=39 // pred_check_branch
        %270 = sbr.rel (%p268) target = $region44
      $region43: #{encoder_forward.9} parent=39 // pred_region
        %p271 = scmp.lt.s32.totalorder %s20, 1
        %s272 = scalar_select %p271, %s20, 1
        %s273 = smul.addr %s272, 8
        %s274 = scalar_lea.vmem %s0, %s273
      $region44: #{encoder_forward.9} parent=39 // pred_fallthru
        _
    $region40: #{encoder_forward.9} parent=5 // pred_fallthru
      _
    %p275 = scmp.le.s32.totalorder 1, %s13
    %p276 = scmp.lt.s32.totalorder %s13, 3
    %p277 = pnand %p275, %p276
    %p278 = pneg %p277
    // Predicated region
    $region45: #{encoder_forward.9} parent=5 // pred_check
      _
    $region46: #{encoder_forward.9} parent=5 // pred_check_branch
      %280 = sbr.rel (%p277) target = $region48
    $region47: #{encoder_forward.9} parent=5 // pred_region
      %s281 = ssub.s32 %s13, 1
      %p282 = scmp.lt.s32.totalorder %s22, 1
      %s283 = scalar_select %p282, %s22, 1
      %s284 = smul.addr %s283, 8
      %s285 = scalar_lea.vmem %s0, %s284
      %p286 = pneg %p51
      %p287 = pneg %p48
      %p288 = pneg %p72
      %p289 = pneg %p69
      %p290 = pneg %p93
      %p291 = pneg %p90
      %p292 = scmp.lt.s32.totalorder %s23, 0
      %s293 = scalar_select %p292, %s23, 0
      %s294 = smul.addr %s293, 4
      %s295 = scalar_lea.vmem %s3, %s294
      %p296 = pneg %p119
      %p297 = pneg %p116
      %p298 = scmp.lt.s32.totalorder %s23, 0
      %s299 = scalar_select %p298, %s23, 0
      %s300 = scalar_lea.vmem %s4, %s299
      %p301 = pneg %p145
      %p302 = pneg %p142
      %s303 = smul.u32 8, %s23
      %p304 = scmp.lt.s32.totalorder %s303, 7
      %s305 = scalar_select %p304, %s303, 7
      %s306 = smul.addr %s305, 4
      %s307 = scalar_lea.vmem %s5, %s306
      %p308 = pneg %p171
      %p309 = pneg %p168
      %p310 = pneg %p192
      %p311 = pneg %p189
      %p312 = pneg %p218
      %p313 = pneg %p215
      %p314 = scmp.lt.s32.totalorder %s22, 1
      %s315 = scalar_select %p314, %s22, 1
      %s316 = smul.addr %s315, 8
      %s317 = scalar_lea.vmem %s7, %s316
      %p318 = scmp.lt.s32.totalorder %s22, 1
      %s319 = scalar_select %p318, %s22, 1
      %s320 = smul.addr %s319, 8
      %s321 = scalar_lea.vmem %s0, %s320
      %p322 = scmp.lt.s32.totalorder %s23, 0
      %s323 = scalar_select %p322, %s23, 0
      %s324 = smul.addr %s323, 4
      %s325 = scalar_lea.vmem %s3, %s324
      %p326 = scmp.lt.s32.totalorder %s23, 0
      %s327 = scalar_select %p326, %s23, 0
      %s328 = scalar_lea.vmem %s4, %s327
      %s329 = smul.u32 8, %s23
      %p330 = scmp.lt.s32.totalorder %s329, 7
      %s331 = scalar_select %p330, %s329, 7
      %s332 = smul.addr %s331, 4
      %s333 = scalar_lea.vmem %s5, %s332
      %s334 = smul.u32 8, %s23
      %p335 = scmp.lt.s32.totalorder %s22, 1
      %s336 = scalar_select %p335, %s22, 1
      %s337 = smul.addr %s336, 8
      %s338 = scalar_lea.vmem %s7, %s337
      %p340 = scmp.eq.s32.totalorder %s23, 0
      // Predicated region
      $region49: #{encoder_forward.9} parent=47 // pred_check
        %p341 = pneg %p340
      $region50: #{encoder_forward.9} parent=47 // pred_check_branch
        %343 = sbr.rel (%p341) target = $region52
      $region51: #{encoder_forward.9} parent=47 // pred_region
        %v344 = vld [vmem:[%s321] sm:$0xff]
        %v345 = vld [vmem:[%s1] sm:$0x1]
        %v346 = vld [vmem:[%s2] sm:$0x1]
        %vm347 = vcmask 261120
        %v348 = vsel %vm347, %v344, 0.0
        %349 = vadd.xlane.f32.xlu0 %v348
        %v350 = vpop.xlane.xlu0 %349
        %v351 = vrcp.pop 32.0
        %v352 = vmul.f32 %v350, %v351
        %v353 = vsub.f32 %v344, %v352
        %v354 = vmul.f32 %v353, %v353
        %v355 = vsel %vm347, %v354, 0.0
        %356 = vadd.xlane.f32.xlu0 %v355
        %v357 = vpop.xlane.xlu0 %356
        %v358 = vmul.f32 %v357, 0.032258064
        %v359 = vrsqrt.pop %v358
        %v360 = vmul.f32 %v358, %v359
        %vm361 = vcmp.eq.f32.partialorder %v358, inf
        %v362 = vsel %vm361, %v358, %v360
        %vm363 = vcmp.eq.f32.partialorder %v358, 0.0
        %v364 = vand.u32 %v358, 2147483648
        %v365 = vsel %vm363, %v364, %v362
        %v367 = vlaneseq
        %v368 = vshrl.u32 %v367, 7
        %v369 = vsub.s32 0, %v368
        %v370 = vrot.slane %v345, %v369
        %v372 = vmul.f32 %v370, %v353
        %v373 = vadd.f32 %v365, 1e-06
        %v374 = vrcp.pop %v373
        %v375 = vmul.f32 %v372, %v374
        %v377 = vlaneseq
        %v378 = vshrl.u32 %v377, 7
        %v379 = vsub.s32 0, %v378
        %v380 = vrot.slane %v346, %v379
        %v382 = vadd.f32 %v375, %v380
        %v383 = vpack.c.bf16 %v382, %v382
        %vm384 = vcmask 257024
        %385 = vst.msk [vmem:[#allocation2] sm:$0xf] %vm384, %v383
        %386 = vst.msk [vmem:[#allocation3] sm:$0xff] %vm347, 0.0
      $region52: #{encoder_forward.9} parent=47 // pred_fallthru
        _
      %v387 = vld [vmem:[#allocation2] sm:$0xf]
      %v388 = vld [vmem:[%s325] sm:$0xf]
      %v389 = vld [vmem:[%s325 + $0x4] sm:$0xf]
      %v390 = vld [vmem:[%s325 + $0x8] sm:$0xf]
      %v391 = vld [vmem:[%s325 + $0xc] sm:$0xf]
      %v392 = vld [vmem:[%s328] sm:$0x1]
      %v394 = vlaneseq
      %v395 = vshrl.u32 %v394, 7
      %v396 = vsub.s32 0, %v395
      %v397 = vrot.slane %v392, %v396
      %v403 = vunpack.c.l.b16 %v388
      %v404 = vunpack.c.l.b16 %v389
      %v405 = vunpack.c.l.b16 %v390
      %v406 = vunpack.c.l.b16 %v391
      %v407 = vpack.c.b16 %v404, %v403
      %v408 = vpack.c.b16 %v406, %v405
      %vm411 = vcmask 261120
      %v413 = vsel %vm411, %v387, 0
      %415 = vmatprep.subr.bf16.mxu0 0
      %416 = vmatpush1.bf16.msra.mxu0 %v407
      %417 = vmatprep.subr.bf16.mxu0 0
      %418 = vmatpush1.bf16.msra.mxu0 %v408
      %419 = vmatprep.subr.bf16.mxu0 0
      %420 = vmatpush1.bf16.msra.mxu0 0
      %421 = vmatprep.subr.bf16.mxu0 0
      %422 = vmatpush1.bf16.msra.mxu0 0
      %423 = vmatprep.subr.bf16.mxu0 0
      %424 = vmatpush1.bf16.msra.mxu0 0
      %425 = vmatprep.subr.bf16.mxu0 0
      %426 = vmatpush1.bf16.msra.mxu0 0
      %427 = vmatprep.subr.bf16.mxu0 0
      %428 = vmatpush1.bf16.msra.mxu0 0
      %429 = vmatprep.subr.bf16.mxu0 0
      %430 = vmatpush1.bf16.msra.mxu0 0
      %431 = vmatprep.subr.bf16.mxu0 0
      %432 = vmatpush1.bf16.msra.mxu0 0
      %433 = vmatprep.subr.bf16.mxu0 0
      %434 = vmatpush1.bf16.msra.mxu0 0
      %435 = vmatprep.subr.bf16.mxu0 0
      %436 = vmatpush1.bf16.msra.mxu0 0
      %437 = vmatprep.subr.bf16.mxu0 0
      %438 = vmatpush1.bf16.msra.mxu0 0
      %439 = vmatprep.subr.bf16.mxu0 0
      %440 = vmatpush1.bf16.msra.mxu0 0
      %441 = vmatprep.subr.bf16.mxu0 0
      %442 = vmatpush1.bf16.msra.mxu0 0
      %443 = vmatprep.subr.bf16.mxu0 0
      %444 = vmatpush1.bf16.msra.mxu0 0
      %445 = vmatprep.subr.bf16.mxu0 0
      %446 = vmatpush1.bf16.msra.mxu0 0
      %447 = vmatprep.mubr.bf16.mxu0 0
      %448 = vmatmul.mubr.bf16.gmra.mrb[0].mxu0 %v413
      %v449 = vpop.f32.mrb[0].mxu0
      %v450 = vadd.f32 %v397, %v449
      %v451 = vpop.f32.mrb[0].mxu0
      %v452 = vpop.f32.mrb[0].mxu0
      %v453 = vpop.f32.mrb[0].mxu0
      %454 = vdwg.mxu0
      %v455 = vmax.f32 %v450, 0.0
      %v456 = vld [vmem:[#allocation3] sm:$0xff]
      %v457 = vpack.c.bf16 %v455, %v455
      %v458 = vld [vmem:[%s333] sm:$0xf]
      %v459 = vld [vmem:[%s333 + $0x4] sm:$0xf]
      %v460 = vld [vmem:[%s333 + $0x8] sm:$0xf]
      %v461 = vld [vmem:[%s333 + $0xc] sm:$0xf]
      %v462 = vld [vmem:[%s333 + $0x10] sm:$0xf]
      %v463 = vld [vmem:[%s333 + $0x14] sm:$0xf]
      %v464 = vld [vmem:[%s333 + $0x18] sm:$0xf]
      %v465 = vld [vmem:[%s333 + $0x1c] sm:$0xf]
      %v474 = vunpack.c.l.b16 %v458
      %v475 = vunpack.c.l.b16 %v459
      %v476 = vunpack.c.l.b16 %v460
      %v477 = vunpack.c.l.b16 %v461
      %v478 = vunpack.c.l.b16 %v462
      %v479 = vunpack.c.l.b16 %v463
      %v480 = vunpack.c.l.b16 %v464
      %v481 = vunpack.c.l.b16 %v465
      %v482 = vpack.c.b16 %v475, %v474
      %v483 = vpack.c.b16 %v477, %v476
      %v484 = vpack.c.b16 %v479, %v478
      %v485 = vpack.c.b16 %v481, %v480
      %vm490 = vcmask 523264
      %v492 = vsel %vm490, %v457, 0
      %494 = vmatprep.subr.bf16.mxu0 0
      %495 = vmatpush1.bf16.msra.mxu0 %v482
      %496 = vmatprep.subr.bf16.mxu0 0
      %497 = vmatpush1.bf16.msra.mxu0 %v483
      %498 = vmatprep.subr.bf16.mxu0 0
      %499 = vmatpush1.bf16.msra.mxu0 %v484
      %500 = vmatprep.subr.bf16.mxu0 0
      %501 = vmatpush1.bf16.msra.mxu0 %v485
      %502 = vmatprep.subr.bf16.mxu0 0
      %503 = vmatpush1.bf16.msra.mxu0 0
      %504 = vmatprep.subr.bf16.mxu0 0
      %505 = vmatpush1.bf16.msra.mxu0 0
      %506 = vmatprep.subr.bf16.mxu0 0
      %507 = vmatpush1.bf16.msra.mxu0 0
      %508 = vmatprep.subr.bf16.mxu0 0
      %509 = vmatpush1.bf16.msra.mxu0 0
      %510 = vmatprep.subr.bf16.mxu0 0
      %511 = vmatpush1.bf16.msra.mxu0 0
      %512 = vmatprep.subr.bf16.mxu0 0
      %513 = vmatpush1.bf16.msra.mxu0 0
      %514 = vmatprep.subr.bf16.mxu0 0
      %515 = vmatpush1.bf16.msra.mxu0 0
      %516 = vmatprep.subr.bf16.mxu0 0
      %517 = vmatpush1.bf16.msra.mxu0 0
      %518 = vmatprep.subr.bf16.mxu0 0
      %519 = vmatpush1.bf16.msra.mxu0 0
      %520 = vmatprep.subr.bf16.mxu0 0
      %521 = vmatpush1.bf16.msra.mxu0 0
      %522 = vmatprep.subr.bf16.mxu0 0
      %523 = vmatpush1.bf16.msra.mxu0 0
      %524 = vmatprep.subr.bf16.mxu0 0
      %525 = vmatpush1.bf16.msra.mxu0 0
      %526 = vmatprep.mubr.bf16.mxu0 0
      %527 = vmatmul.mubr.bf16.gmra.mrb[0].mxu0 %v492
      %v528 = vpop.f32.mrb[0].mxu0
      %v529 = vadd.f32 0.0, %v528
      %v530 = vpop.f32.mrb[0].mxu0
      %v531 = vpop.f32.mrb[0].mxu0
      %v532 = vpop.f32.mrb[0].mxu0
      %533 = vdwg.mxu0
      %v534 = vadd.f32 %v456, %v529
      %535 = vst.msk [vmem:[#allocation3] sm:$0xff] %vm411, %v534
      // Predicated region
      $region53: #{encoder_forward.9} parent=47 // pred_check
        %p536 = pneg %p340
      $region54: #{encoder_forward.9} parent=47 // pred_check_branch
        %538 = sbr.rel (%p536) target = $region56
      $region55: #{encoder_forward.9} parent=47 // pred_region
        %v539 = vld [vmem:[#allocation3] sm:$0xff]
        %v540 = vld [vmem:[%s6] sm:$0x1]
        %v542 = vlaneseq
        %v543 = vshrl.u32 %v542, 7
        %v544 = vsub.s32 0, %v543
        %v545 = vrot.slane %v540, %v544
        %v547 = vadd.f32 %v539, %v545
        %v548 = vld [vmem:[%s321] sm:$0xff]
        %v549 = vadd.f32 %v548, %v547
        %550 = vst.msk [vmem:[%s338] sm:$0xff] %vm411, %v549
      $region56: #{encoder_forward.9} parent=47 // pred_fallthru
        _
      %p551 = scmp.lt.s32.totalorder %s22, 1
      %s552 = scalar_select %p551, %s22, 1
      %s553 = smul.addr %s552, 8
      %s554 = scalar_lea.vmem %s7, %s553
      // Predicated region
      $region57: #{encoder_forward.9} parent=47 // pred_check
        %p555 = pneg %p215
      $region58: #{encoder_forward.9} parent=47 // pred_check_branch
        %557 = sbr.rel (%p555) target = $region60
      $region59: #{encoder_forward.9} parent=47 // pred_region
        _
      $region60: #{encoder_forward.9} parent=47 // pred_fallthru
        _
    $region48: #{encoder_forward.9} parent=5 // pred_fallthru
      _
    %p558 = scmp.le.s32.totalorder 2, %s13
    // Predicated region
    $region61: #{encoder_forward.9} parent=5 // pred_check
      %p559 = pneg %p558
    $region62: #{encoder_forward.9} parent=5 // pred_check_branch
      %561 = sbr.rel (%p559) target = $region64
    $region63: #{encoder_forward.9} parent=5 // pred_region
      %s562 = ssub.s32 %s13, 2
      // Predicated region
      $region65: #{encoder_forward.9} parent=63 // pred_check
        %p563 = pneg %p221
      $region66: #{encoder_forward.9} parent=63 // pred_check_branch
        %565 = sbr.rel (%p563) target = $region68
      $region67: #{encoder_forward.9} parent=63 // pred_region
        %p566 = scmp.lt.s32.totalorder %s24, 1
        %s567 = scalar_select %p566, %s24, 1
        %s568 = smul.addr %s567, 8
        %s569 = scalar_lea.vmem %s7, %s568
      $region68: #{encoder_forward.9} parent=63 // pred_fallthru
        _
    $region64: #{encoder_forward.9} parent=5 // pred_fallthru
      _
  $region6: #{encoder_forward.9} parent=0 // loop_footer
    %s17 = sadd.s32 1, %s13
  $region7: #{encoder_forward.9} parent=0 // loop_footer_branch
    %12 = sbr.rel target = $region3
  $region8: #{encoder_forward.9} parent=0 // loop_exit
    _

// kernel: encoder_forward.8
$region0: #{encoder_forward.8}
  #allocation0 [shape = 'u32[]', space=smem, size = 0x4, offset = 0x4, fixed_abs, tag = 'smem constant byte address 0x4 - core index']
  #allocation1 [shape = 'u32[144,128]{1,0:T(1,128)}', space=vmem, size = 0x12000, scoped, tag = 'internal scratch']
  #allocation2 [shape = 'bf16[8,32]{1,0:T(8,128)(2,1)}', space=vmem, size = 0x800, scoped, tag = 'scratch operand']
  %s0 = inlined_call_operand.vmem [shape: bf16[2,8,96], index: 0, kind: input, shape index: {}]
  %s1 = inlined_call_operand.vmem [shape: f32[2,1,8], index: 1, kind: input, shape index: {}]
  %s2 = inlined_call_operand.vmem [shape: bf16[32,32], index: 2, kind: input, shape index: {}]
  %s3 = inlined_call_operand.vmem [shape: f32[1,32], index: 3, kind: input, shape index: {}]
  %s4 = inlined_call_operand.vmem [shape: f32[2,8,32], index: 4, kind: input, shape index: {}, may-alias: {4,5}]
  %s5 = inlined_call_operand.vmem [shape: f32[2,8,32], index: 5, kind: output, shape index: {}, may-alias: {4,5}]
  %s6 = sld [smem:[#allocation0]]
  $region53: #{encoder_forward.8} parent=0
    _
  %s8 = ssub.s32 1, %s6
  %s9 = scalar_select 0, %s8, %s6
  loop: start=0, step=1, limit=4
  $region2: #{encoder_forward.8} parent=0 // loop_pre_header
    _
  $region3: #{encoder_forward.8} parent=0 // loop_header
    %s11 = sphi 0, %s15
    %p12 = scmp.ge.s32.totalorder %s11, 4
    %s18 = sphi 0, %s30
    %s19 = sphi 0, %s26
    %s20 = sphi 0, %s18
    %s21 = sphi 0, %s19
    %s22 = sphi 0, %s20
    %s23 = sphi 0, %s21
    %s33 = sphi 0, %s35
    %s36 = sphi 0, %s33
    %s37 = sphi 0, %s36
    %s53 = sphi 0, %s37
    %s59 = sphi 0, %s61
    %s62 = sphi 0, %s59
    %s63 = sphi 0, %s62
    %s79 = sphi 0, %s63
    %s83 = sphi 0, %s83
    %s85 = sphi 0, %s83
    %s86 = sphi 0, %s85
    %s100 = sphi 0, %s86
    %s104 = sphi 0, %s104
    %s106 = sphi 0, %s104
    %s107 = sphi 0, %s106
    %s121 = sphi 0, %s107
    %s129 = sphi 0, %s131
    %s132 = sphi 0, %s129
    %s133 = sphi 0, %s132
    %s149 = sphi 0, %s133
    %s157 = sphi 0, %s159
    %s160 = sphi 0, %s157
    %s161 = sphi 0, %s160
    %s177 = sphi 0, %s161
  $region4: #{encoder_forward.8} parent=0 // loop_header_branch
    %14 = sbr.rel (%p12) target = $region8
  $region5: #{encoder_forward.8} parent=0 // loop_body
    %s16 = ssub.s32 %s11, 1
    %s17 = ssub.s32 %s11, 2
    %s24 = sadd.s32 1, %s19
    %p25 = scmp.ge.s32.totalorder %s24, 1
    %s26 = scalar_select %p25, 0, %s24
    %s27 = sadd.s32 1, %s18
    %s28 = scalar_select %p25, %s27, %s18
    %p29 = scmp.ge.s32.totalorder %s28, 2
    %s30 = scalar_select %p29, 0, %s28
    %s31 = ssub.s32 %s18, %s30
    %p32 = scmp.eq.s32.totalorder %s31, 0
    %s34 = sadd.s32 %s33, 1
    %s35 = scalar_select %p32, %s33, %s34
    %p38 = pneg %p32
    %p39 = scmp.eq.s32.totalorder %s11, 1
    %p40 = por %p38, %p39
    %p41 = scmp.ne.s32.totalorder %s33, %s36
    %p42 = scmp.eq.s32.totalorder %s11, 0
    %p43 = por %p41, %p42
    %p44 = scmp.ne.s32.totalorder %s33, %s36
    %p45 = scmp.eq.s32.totalorder %s16, 1
    %p46 = por %p44, %p45
    %p47 = scmp.ne.s32.totalorder %s36, %s37
    %p48 = scmp.eq.s32.totalorder %s16, 0
    %p49 = por %p47, %p48
    %p50 = scmp.ne.s32.totalorder %s36, %s37
    %p51 = scmp.eq.s32.totalorder %s17, 1
    %p52 = por %p50, %p51
    %p54 = scmp.ne.s32.totalorder %s37, %s53
    %p55 = scmp.eq.s32.totalorder %s17, 0
    %p56 = por %p54, %p55
    %s57 = ssub.s32 %s18, %s30
    %p58 = scmp.eq.s32.totalorder %s57, 0
    %s60 = sadd.s32 %s59, 1
    %s61 = scalar_select %p58, %s59, %s60
    %p64 = pneg %p58
    %p65 = scmp.eq.s32.totalorder %s11, 1
    %p66 = por %p64, %p65
    %p67 = scmp.ne.s32.totalorder %s59, %s62
    %p68 = scmp.eq.s32.totalorder %s11, 0
    %p69 = por %p67, %p68
    %p70 = scmp.ne.s32.totalorder %s59, %s62
    %p71 = scmp.eq.s32.totalorder %s16, 1
    %p72 = por %p70, %p71
    %p73 = scmp.ne.s32.totalorder %s62, %s63
    %p74 = scmp.eq.s32.totalorder %s16, 0
    %p75 = por %p73, %p74
    %p76 = scmp.ne.s32.totalorder %s62, %s63
    %p77 = scmp.eq.s32.totalorder %s17, 1
    %p78 = por %p76, %p77
    %p80 = scmp.ne.s32.totalorder %s63, %s79
    %p81 = scmp.eq.s32.totalorder %s17, 0
    %p82 = por %p80, %p81
    %s84 = sadd.s32 %s83, 1
    %p87 = scmp.eq.s32.totalorder %s11, 1
    %p88 = scmp.ne.s32.totalorder %s83, %s85
    %p89 = scmp.eq.s32.totalorder %s11, 0
    %p90 = por %p88, %p89
    %p91 = scmp.ne.s32.totalorder %s83, %s85
    %p92 = scmp.eq.s32.totalorder %s16, 1
    %p93 = por %p91, %p92
    %p94 = scmp.ne.s32.totalorder %s85, %s86
    %p95 = scmp.eq.s32.totalorder %s16, 0
    %p96 = por %p94, %p95
    %p97 = scmp.ne.s32.totalorder %s85, %s86
    %p98 = scmp.eq.s32.totalorder %s17, 1
    %p99 = por %p97, %p98
    %p101 = scmp.ne.s32.totalorder %s86, %s100
    %p102 = scmp.eq.s32.totalorder %s17, 0
    %p103 = por %p101, %p102
    %s105 = sadd.s32 %s104, 1
    %p108 = scmp.eq.s32.totalorder %s11, 1
    %p109 = scmp.ne.s32.totalorder %s104, %s106
    %p110 = scmp.eq.s32.totalorder %s11, 0
    %p111 = por %p109, %p110
    %p112 = scmp.ne.s32.totalorder %s104, %s106
    %p113 = scmp.eq.s32.totalorder %s16, 1
    %p114 = por %p112, %p113
    %p115 = scmp.ne.s32.totalorder %s106, %s107
    %p116 = scmp.eq.s32.totalorder %s16, 0
    %p117 = por %p115, %p116
    %p118 = scmp.ne.s32.totalorder %s106, %s107
    %p119 = scmp.eq.s32.totalorder %s17, 1
    %p120 = por %p118, %p119
    %p122 = scmp.ne.s32.totalorder %s107, %s121
    %p123 = scmp.eq.s32.totalorder %s17, 0
    %p124 = por %p122, %p123
    %s125 = ssub.s32 %s18, %s30
    %s126 = ssub.s32 %s19, %s26
    %s127 = sor.u32 %s125, %s126
    %p128 = scmp.eq.s32.totalorder %s127, 0
    %s130 = sadd.s32 %s129, 1
    %s131 = scalar_select %p128, %s129, %s130
    %p134 = pneg %p128
    %p135 = scmp.eq.s32.totalorder %s11, 1
    %p136 = por %p134, %p135
    %p137 = scmp.ne.s32.totalorder %s129, %s132
    %p138 = scmp.eq.s32.totalorder %s11, 0
    %p139 = por %p137, %p138
    %p140 = scmp.ne.s32.totalorder %s129, %s132
    %p141 = scmp.eq.s32.totalorder %s16, 1
    %p142 = por %p140, %p141
    %p143 = scmp.ne.s32.totalorder %s132, %s133
    %p144 = scmp.eq.s32.totalorder %s16, 0
    %p145 = por %p143, %p144
    %p146 = scmp.ne.s32.totalorder %s132, %s133
    %p147 = scmp.eq.s32.totalorder %s17, 1
    %p148 = por %p146, %p147
    %p150 = scmp.ne.s32.totalorder %s133, %s149
    %p151 = scmp.eq.s32.totalorder %s17, 0
    %p152 = por %p150, %p151
    %s153 = ssub.s32 %s18, %s30
    %s154 = ssub.s32 %s19, %s26
    %s155 = sor.u32 %s153, %s154
    %p156 = scmp.eq.s32.totalorder %s155, 0
    %s158 = sadd.s32 %s157, 1
    %s159 = scalar_select %p156, %s157, %s158
    %p162 = pneg %p156
    %p163 = scmp.eq.s32.totalorder %s11, 1
    %p164 = por %p162, %p163
    %p165 = scmp.ne.s32.totalorder %s157, %s160
    %p166 = scmp.eq.s32.totalorder %s11, 0
    %p167 = por %p165, %p166
    %p168 = scmp.ne.s32.totalorder %s157, %s160
    %p169 = scmp.eq.s32.totalorder %s16, 1
    %p170 = por %p168, %p169
    %p171 = scmp.ne.s32.totalorder %s160, %s161
    %p172 = scmp.eq.s32.totalorder %s16, 0
    %p173 = por %p171, %p172
    %p174 = scmp.ne.s32.totalorder %s160, %s161
    %p175 = scmp.eq.s32.totalorder %s17, 1
    %p176 = por %p174, %p175
    %p178 = scmp.ne.s32.totalorder %s161, %s177
    %p179 = scmp.eq.s32.totalorder %s17, 0
    %p180 = por %p178, %p179
    %p181 = scmp.le.s32.totalorder 1, %s11
    %p182 = scmp.lt.s32.totalorder %s11, 3
    %p183 = pnand %p181, %p182
    %p184 = pneg %p183
    // Predicated region
    $region9: #{encoder_forward.8} parent=5 // pred_check
      _
    $region10: #{encoder_forward.8} parent=5 // pred_check_branch
      %186 = sbr.rel (%p183) target = $region12
    $region11: #{encoder_forward.8} parent=5 // pred_region
      %s187 = ssub.s32 %s11, 1
      // Predicated region
      $region13: #{encoder_forward.8} parent=11 // pred_check
        %p188 = pneg %p96
      $region14: #{encoder_forward.8} parent=11 // pred_check_branch
        %190 = sbr.rel (%p188) target = $region16
      $region15: #{encoder_forward.8} parent=11 // pred_region
        _
      $region16: #{encoder_forward.8} parent=11 // pred_fallthru
        _
      // Predicated region
      $region17: #{encoder_forward.8} parent=11 // pred_check
        %p191 = pneg %p117
      $region18: #{encoder_forward.8} parent=11 // pred_check_branch
        %193 = sbr.rel (%p191) target = $region20
      $region19: #{encoder_forward.8} parent=11 // pred_region
        _
      $region20: #{encoder_forward.8} parent=11 // pred_fallthru
        _
    $region12: #{encoder_forward.8} parent=5 // pred_fallthru
      _
    %p194 = scmp.lt.s32.totalorder %s11, 2
    // Predicated region
    $region21: #{encoder_forward.8} parent=5 // pred_check
      %p195 = pneg %p194
    $region22: #{encoder_forward.8} parent=5 // pred_check_branch
      %197 = sbr.rel (%p195) target = $region24
    $region23: #{encoder_forward.8} parent=5 // pred_region
      // Predicated region
      $region25: #{encoder_forward.8} parent=23 // pred_check
        %p198 = pneg %p43
      $region26: #{encoder_forward.8} parent=23 // pred_check_branch
        %200 = sbr.rel (%p198) target = $region28
      $region27: #{encoder_forward.8} parent=23 // pred_region
        %p201 = scmp.lt.s32.totalorder %s18, 1
        %s202 = scalar_select %p201, %s18, 1
        %s203 = smul.addr %s202, 4
        %s204 = scalar_lea.vmem %s0, %s203
      $region28: #{encoder_forward.8} parent=23 // pred_fallthru
        _
      // Predicated region
      $region29: #{encoder_forward.8} parent=23 // pred_check
        %p205 = pneg %p69
      $region30: #{encoder_forward.8} parent=23 // pred_check_branch
        %207 = sbr.rel (%p205) target = $region32
      $region31: #{encoder_forward.8} parent=23 // pred_region
        %p208 = scmp.lt.s32.totalorder %s18, 1
        %s209 = scalar_select %p208, %s18, 1
        %s210 = scalar_lea.vmem %s1, %s209
      $region32: #{encoder_forward.8} parent=23 // pred_fallthru
        _
      // Predicated region
      $region33: #{encoder_forward.8} parent=23 // pred_check
        %p211 = pneg %p139
      $region34: #{encoder_forward.8} parent=23 // pred_check_branch
        %213 = sbr.rel (%p211) target = $region36
      $region35: #{encoder_forward.8} parent=23 // pred_region
        %p214 = scmp.lt.s32.totalorder %s18, 1
        %s215 = scalar_select %p214, %s18, 1
        %p216 = scmp.lt.s32.totalorder %s19, 0
        %s217 = scalar_select %p216, %s19, 0
        %s218 = sadd.s32 %s217, %s215
        %s219 = smul.addr %s218, 8
        %s220 = scalar_lea.vmem %s4, %s219
      $region36: #{encoder_forward.8} parent=23 // pred_fallthru
        _
    $region24: #{encoder_forward.8} parent=5 // pred_fallthru
      _
    %p221 = scmp.le.s32.totalorder 1, %s11
    %p222 = scmp.lt.s32.totalorder %s11, 3
    %p223 = pnand %p221, %p222
    %p224 = pneg %p223
    // Predicated region
    $region37: #{encoder_forward.8} parent=5 // pred_check
      _
    $region38: #{encoder_forward.8} parent=5 // pred_check_branch
      %226 = sbr.rel (%p223) target = $region40
    $region39: #{encoder_forward.8} parent=5 // pred_region
      %s227 = ssub.s32 %s11, 1
      %p228 = scmp.lt.s32.totalorder %s20, 1
      %s229 = scalar_select %p228, %s20, 1
      %s230 = smul.addr %s229, 4
      %s231 = scalar_lea.vmem %s0, %s230
      %p232 = pneg %p49
      %p233 = pneg %p46
      %p234 = scmp.lt.s32.totalorder %s20, 1
      %s235 = scalar_select %p234, %s20, 1
      %s236 = scalar_lea.vmem %s1, %s235
      %p237 = pneg %p75
      %p238 = pneg %p72
      %p239 = pneg %p96
      %p240 = pneg %p93
      %p241 = pneg %p117
      %p242 = pneg %p114
      %p243 = scmp.lt.s32.totalorder %s20, 1
      %s244 = scalar_select %p243, %s20, 1
      %p245 = scmp.lt.s32.totalorder %s21, 0
      %s246 = scalar_select %p245, %s21, 0
      %s247 = sadd.s32 %s246, %s244
      %s248 = smul.addr %s247, 8
      %s249 = scalar_lea.vmem %s4, %s248
      %p250 = pneg %p145
      %p251 = pneg %p142
      %p252 = pneg %p173
      %p253 = pneg %p170
      %p254 = scmp.lt.s32.totalorder %s20, 1
      %s255 = scalar_select %p254, %s20, 1
      %p256 = scmp.lt.s32.totalorder %s21, 0
      %s257 = scalar_select %p256, %s21, 0
      %s258 = sadd.s32 %s257, %s255
      %s259 = smul.addr %s258, 8
      %s260 = scalar_lea.vmem %s5, %s259
      %p261 = scmp.lt.s32.totalorder %s20, 1
      %s262 = scalar_select %p261, %s20, 1
      %s263 = smul.addr %s262, 4
      %s264 = scalar_lea.vmem %s0, %s263
      %p265 = scmp.lt.s32.totalorder %s20, 1
      %s266 = scalar_select %p265, %s20, 1
      %s267 = scalar_lea.vmem %s1, %s266
      %p268 = scmp.lt.s32.totalorder %s20, 1
      %s269 = scalar_select %p268, %s20, 1
      %p270 = scmp.lt.s32.totalorder %s21, 0
      %s271 = scalar_select %p270, %s21, 0
      %s272 = sadd.s32 %s271, %s269
      %s273 = smul.addr %s272, 8
      %s274 = scalar_lea.vmem %s4, %s273
      %p275 = scmp.lt.s32.totalorder %s20, 1
      %s276 = scalar_select %p275, %s20, 1
      %p277 = scmp.lt.s32.totalorder %s21, 0
      %s278 = scalar_select %p277, %s21, 0
      %s279 = sadd.s32 %s278, %s276
      %s280 = smul.addr %s279, 8
      %s281 = scalar_lea.vmem %s5, %s280
      %s283 = smul.u32 %s21, 8
      %s284 = sshra.s32 %s283, 3
      %s285 = sand.u32 %s283, 7
      %s286 = smul.addr %s284, 4
      %s287 = scalar_lea.vmem %s264, %s286
      %v288 = vld [vmem:[%s287] sm:$0xf]
      %v289 = vld [vmem:[%s267] sm:$0x1]
      %v290 = vsub.f32 %v289, 1.0
      %v291 = vmul.f32 %v290, 1e+09
      %v292 = vld [vmem:[%s264] sm:$0xf]
      %v294 = vunpack.c.l.b16 %v292
      %v295 = vpack.c.b16 %v294, %v294
      %296 = vrot.lane.b32.xlu0 %v295, 96
      %v297 = vpop.permute.xlu0 %296
      %vm298 = vcmask 64512
      %v300 = vsel %vm298, %v288, 0
      %v303 = vsel %vm298, %v297, 0
      %305 = vmatprep.subr.bf16.mxu0 0
      %306 = vmatpush1.bf16.xpose.msra.mxu0 %v303
      %307 = vmatprep.subr.bf16.mxu0 0
      %308 = vmatpush1.bf16.xpose.msra.mxu0 0
      %309 = vmatprep.subr.bf16.mxu0 0
      %310 = vmatpush1.bf16.xpose.msra.mxu0 0
      %311 = vmatprep.subr.bf16.mxu0 0
      %312 = vmatpush1.bf16.xpose.msra.mxu0 0
      %313 = vmatprep.subr.bf16.mxu0 0
      %314 = vmatpush1.bf16.xpose.msra.mxu0 0
      %315 = vmatprep.subr.bf16.mxu0 0
      %316 = vmatpush1.bf16.xpose.msra.mxu0 0
      %317 = vmatprep.subr.bf16.mxu0 0
      %318 = vmatpush1.bf16.xpose.msra.mxu0 0
      %319 = vmatprep.subr.bf16.mxu0 0
      %320 = vmatpush1.bf16.xpose.msra.mxu0 0
      %321 = vmatprep.subr.bf16.mxu0 0
      %322 = vmatpush1.bf16.xpose.msra.mxu0 0
      %323 = vmatprep.subr.bf16.mxu0 0
      %324 = vmatpush1.bf16.xpose.msra.mxu0 0
      %325 = vmatprep.subr.bf16.mxu0 0
      %326 = vmatpush1.bf16.xpose.msra.mxu0 0
      %327 = vmatprep.subr.bf16.mxu0 0
      %328 = vmatpush1.bf16.xpose.msra.mxu0 0
      %329 = vmatprep.subr.bf16.mxu0 0
      %330 = vmatpush1.bf16.xpose.msra.mxu0 0
      %331 = vmatprep.subr.bf16.mxu0 0
      %332 = vmatpush1.bf16.xpose.msra.mxu0 0
      %333 = vmatprep.subr.bf16.mxu0 0
      %334 = vmatpush1.bf16.xpose.msra.mxu0 0
      %335 = vmatprep.subr.bf16.mxu0 0
      %336 = vmatpush1.bf16.xpose.msra.mxu0 0
      %337 = vmatprep.mubr.bf16.mxu0 0
      %338 = vmatmul.mubr.bf16.gmra.mrb[0].mxu0 %v300
      %v339 = vpop.f32.mrb[0].mxu0
      %v340 = vadd.f32 0.0, %v339
      %v341 = vpop.f32.mrb[0].mxu0
      %v342 = vpop.f32.mrb[0].mxu0
      %v343 = vpop.f32.mrb[0].mxu0
      %344 = vdwg.mxu0
      %v345 = vmul.f32 %v340, 0.35355338
      %v347 = vlaneseq
      %v348 = vshrl.u32 %v347, 7
      %v349 = vsub.s32 0, %v348
      %v350 = vrot.slane %v291, %v349
      %v352 = vadd.f32 %v345, %v350
      %v353 = vsel %vm298, %v352, -inf
      %354 = vmax.xlane.f32.xlu0 %v353
      %v355 = vpop.xlane.xlu0 %354
      %v356 = vsub.f32 %v352, %v355
      %v357 = vmul.f32 %v356, 1.442695
      %v358 = vpow.pop %v357
      %v359 = vsel %vm298, %v358, 0.0
      %360 = vadd.xlane.f32.xlu0 %v359
      %v361 = vpop.xlane.xlu0 %360
      %v362 = vrcp.pop %v361
      %v363 = vmul.f32 %v358, %v362
      %v364 = vpack.c.bf16 %v363, %v363
      %365 = vrot.lane.b32.xlu0 %v295, 64
      %v366 = vpop.permute.xlu0 %365
      %v368 = vsel %vm298, %v364, 0
      %vm370 = vcmask 1043456
      %v372 = vsel %vm370, %v366, 0
      %374 = vmatprep.subr.bf16.mxu0 0
      %375 = vmatpush1.bf16.msra.mxu0 %v372
      %376 = vmatprep.subr.bf16.mxu0 0
      %377 = vmatpush1.bf16.msra.mxu0 0
      %378 = vmatprep.subr.bf16.mxu0 0
      %379 = vmatpush1.bf16.msra.mxu0 0
      %380 = vmatprep.subr.bf16.mxu0 0
      %381 = vmatpush1.bf16.msra.mxu0 0
      %382 = vmatprep.subr.bf16.mxu0 0
      %383 = vmatpush1.bf16.msra.mxu0 0
      %384 = vmatprep.subr.bf16.mxu0 0
      %385 = vmatpush1.bf16.msra.mxu0 0
      %386 = vmatprep.subr.bf16.mxu0 0
      %387 = vmatpush1.bf16.msra.mxu0 0
      %388 = vmatprep.subr.bf16.mxu0 0
      %389 = vmatpush1.bf16.msra.mxu0 0
      %390 = vmatprep.subr.bf16.mxu0 0
      %391 = vmatpush1.bf16.msra.mxu0 0
      %392 = vmatprep.subr.bf16.mxu0 0
      %393 = vmatpush1.bf16.msra.mxu0 0
      %394 = vmatprep.subr.bf16.mxu0 0
      %395 = vmatpush1.bf16.msra.mxu0 0
      %396 = vmatprep.subr.bf16.mxu0 0
      %397 = vmatpush1.bf16.msra.mxu0 0
      %398 = vmatprep.subr.bf16.mxu0 0
      %399 = vmatpush1.bf16.msra.mxu0 0
      %400 = vmatprep.subr.bf16.mxu0 0
      %401 = vmatpush1.bf16.msra.mxu0 0
      %402 = vmatprep.subr.bf16.mxu0 0
      %403 = vmatpush1.bf16.msra.mxu0 0
      %404 = vmatprep.subr.bf16.mxu0 0
      %405 = vmatpush1.bf16.msra.mxu0 0
      %406 = vmatprep.mubr.bf16.mxu0 0
      %407 = vmatmul.mubr.bf16.gmra.mrb[0].mxu0 %v368
      %v408 = vpop.f32.mrb[0].mxu0
      %v409 = vadd.f32 0.0, %v408
      %v410 = vpop.f32.mrb[0].mxu0
      %v411 = vpop.f32.mrb[0].mxu0
      %v412 = vpop.f32.mrb[0].mxu0
      %413 = vdwg.mxu0
      %v414 = vpack.c.bf16 %v409, %v409
      %vm415 = vcmask 60416
      %416 = vst.msk [vmem:[#allocation2] sm:$0xf] %vm415, %v414
      %v417 = vld [vmem:[%s264] sm:$0xf]
      %v419 = vunpack.c.l.b16 %v288
      %v420 = vpack.c.b16 %v419, %v419
      %421 = vrot.lane.b32.xlu0 %v420, 120
      %v422 = vpop.permute.xlu0 %421
      %v424 = vunpack.c.l.b16 %v417
      %v425 = vpack.c.b16 %v424, %v424
      %426 = vrot.lane.b32.xlu0 %v425, 88
      %v427 = vpop.permute.xlu0 %426
      %v429 = vsel %vm298, %v422, 0
      %v432 = vsel %vm298, %v427, 0
      %434 = vmatprep.subr.bf16.mxu0 0
      %435 = vmatpush1.bf16.xpose.msra.mxu0 %v432
      %436 = vmatprep.subr.bf16.mxu0 0
      %437 = vmatpush1.bf16.xpose.msra.mxu0 0
      %438 = vmatprep.subr.bf16.mxu0 0
      %439 = vmatpush1.bf16.xpose.msra.mxu0 0
      %440 = vmatprep.subr.bf16.mxu0 0
      %441 = vmatpush1.bf16.xpose.msra.mxu0 0
      %442 = vmatprep.subr.bf16.mxu0 0
      %443 = vmatpush1.bf16.xpose.msra.mxu0 0
      %444 = vmatprep.subr.bf16.mxu0 0
      %445 = vmatpush1.bf16.xpose.msra.mxu0 0
      %446 = vmatprep.subr.bf16.mxu0 0
      %447 = vmatpush1.bf16.xpose.msra.mxu0 0
      %448 = vmatprep.subr.bf16.mxu0 0
      %449 = vmatpush1.bf16.xpose.msra.mxu0 0
      %450 = vmatprep.subr.bf16.mxu0 0
      %451 = vmatpush1.bf16.xpose.msra.mxu0 0
      %452 = vmatprep.subr.bf16.mxu0 0
      %453 = vmatpush1.bf16.xpose.msra.mxu0 0
      %454 = vmatprep.subr.bf16.mxu0 0
      %455 = vmatpush1.bf16.xpose.msra.mxu0 0
      %456 = vmatprep.subr.bf16.mxu0 0
      %457 = vmatpush1.bf16.xpose.msra.mxu0 0
      %458 = vmatprep.subr.bf16.mxu0 0
      %459 = vmatpush1.bf16.xpose.msra.mxu0 0
      %460 = vmatprep.subr.bf16.mxu0 0
      %461 = vmatpush1.bf16.xpose.msra.mxu0 0
      %462 = vmatprep.subr.bf16.mxu0 0
      %463 = vmatpush1.bf16.xpose.msra.mxu0 0
      %464 = vmatprep.subr.bf16.mxu0 0
      %465 = vmatpush1.bf16.xpose.msra.mxu0 0
      %466 = vmatprep.mubr.bf16.mxu0 0
      %467 = vmatmul.mubr.bf16.gmra.mrb[0].mxu0 %v429
      %v468 = vpop.f32.mrb[0].mxu0
      %v469 = vadd.f32 0.0, %v468
      %v470 = vpop.f32.mrb[0].mxu0
      %v471 = vpop.f32.mrb[0].mxu0
      %v472 = vpop.f32.mrb[0].mxu0
      %473 = vdwg.mxu0
      %v474 = vmul.f32 %v469, 0.35355338
      %v475 = vadd.f32 %v474, %v350
      %v476 = vsel %vm298, %v475, -inf
      %477 = vmax.xlane.f32.xlu0 %v476
      %v478 = vpop.xlane.xlu0 %477
      %v479 = vsub.f32 %v475, %v478
      %v480 = vmul.f32 %v479, 1.442695
      %v481 = vpow.pop %v480
      %v482 = vsel %vm298, %v481, 0.0
      %483 = vadd.xlane.f32.xlu0 %v482
      %v484 = vpop.xlane.xlu0 %483
      %v485 = vrcp.pop %v484
      %v486 = vmul.f32 %v481, %v485
      %v487 = vpack.c.bf16 %v486, %v486
      %488 = vrot.lane.b32.xlu0 %v425, 56
      %v489 = vpop.permute.xlu0 %488
      %v491 = vsel %vm298, %v487, 0
      %v494 = vsel %vm370, %v489, 0
      %496 = vmatprep.subr.bf16.mxu0 0
      %497 = vmatpush1.bf16.msra.mxu0 %v494
      %498 = vmatprep.subr.bf16.mxu0 0
      %499 = vmatpush1.bf16.msra.mxu0 0
      %500 = vmatprep.subr.bf16.mxu0 0
      %501 = vmatpush1.bf16.msra.mxu0 0
      %502 = vmatprep.subr.bf16.mxu0 0
      %503 = vmatpush1.bf16.msra.mxu0 0
      %504 = vmatprep.subr.bf16.mxu0 0
      %505 = vmatpush1.bf16.msra.mxu0 0
      %506 = vmatprep.subr.bf16.mxu0 0
      %507 = vmatpush1.bf16.msra.mxu0 0
      %508 = vmatprep.subr.bf16.mxu0 0
      %509 = vmatpush1.bf16.msra.mxu0 0
      %510 = vmatprep.subr.bf16.mxu0 0
      %511 = vmatpush1.bf16.msra.mxu0 0
      %512 = vmatprep.subr.bf16.mxu0 0
      %513 = vmatpush1.bf16.msra.mxu0 0
      %514 = vmatprep.subr.bf16.mxu0 0
      %515 = vmatpush1.bf16.msra.mxu0 0
      %516 = vmatprep.subr.bf16.mxu0 0
      %517 = vmatpush1.bf16.msra.mxu0 0
      %518 = vmatprep.subr.bf16.mxu0 0
      %519 = vmatpush1.bf16.msra.mxu0 0
      %520 = vmatprep.subr.bf16.mxu0 0
      %521 = vmatpush1.bf16.msra.mxu0 0
      %522 = vmatprep.subr.bf16.mxu0 0
      %523 = vmatpush1.bf16.msra.mxu0 0
      %524 = vmatprep.subr.bf16.mxu0 0
      %525 = vmatpush1.bf16.msra.mxu0 0
      %526 = vmatprep.subr.bf16.mxu0 0
      %527 = vmatpush1.bf16.msra.mxu0 0
      %528 = vmatprep.mubr.bf16.mxu0 0
      %529 = vmatmul.mubr.bf16.gmra.mrb[0].mxu0 %v491
      %v530 = vpop.f32.mrb[0].mxu0
      %v531 = vadd.f32 0.0, %v530
      %v532 = vpop.f32.mrb[0].mxu0
      %v533 = vpop.f32.mrb[0].mxu0
      %v534 = vpop.f32.mrb[0].mxu0
      %535 = vdwg.mxu0
      %v536 = vpack.c.bf16 %v531, %v531
      %v538 = vunpack.c.l.b16 %v536
      %v539 = vpack.c.b16 %v538, %v538
      %540 = vrot.lane.b32.xlu0 %v539, 8
      %v541 = vpop.permute.xlu0 %540
      %vm543 = vcmask 126016
      %544 = vst.msk [vmem:[#allocation2] sm:$0xf] %vm543, %v541
      %v545 = vld [vmem:[%s264] sm:$0xf]
      %546 = vrot.lane.b32.xlu0 %v420, 112
      %v547 = vpop.permute.xlu0 %546
      %v549 = vunpack.c.l.b16 %v545
      %v550 = vpack.c.b16 %v549, %v549
      %551 = vrot.lane.b32.xlu0 %v550, 80
      %v552 = vpop.permute.xlu0 %551
      %v554 = vsel %vm298, %v547, 0
      %v557 = vsel %vm298, %v552, 0
      %559 = vmatprep.subr.bf16.mxu0 0
      %560 = vmatpush1.bf16.xpose.msra.mxu0 %v557
      %561 = vmatprep.subr.bf16.mxu0 0
      %562 = vmatpush1.bf16.xpose.msra.mxu0 0
      %563 = vmatprep.subr.bf16.mxu0 0
      %564 = vmatpush1.bf16.xpose.msra.mxu0 0
      %565 = vmatprep.subr.bf16.mxu0 0
      %566 = vmatpush1.bf16.xpose.msra.mxu0 0
      %567 = vmatprep.subr.bf16.mxu0 0
      %568 = vmatpush1.bf16.xpose.msra.mxu0 0
      %569 = vmatprep.subr.bf16.mxu0 0
      %570 = vmatpush1.bf16.xpose.msra.mxu0 0
      %571 = vmatprep.subr.bf16.mxu0 0
      %572 = vmatpush1.bf16.xpose.msra.mxu0 0
      %573 = vmatprep.subr.bf16.mxu0 0
      %574 = vmatpush1.bf16.xpose.msra.mxu0 0
      %575 = vmatprep.subr.bf16.mxu0 0
      %576 = vmatpush1.bf16.xpose.msra.mxu0 0
      %577 = vmatprep.subr.bf16.mxu0 0
      %578 = vmatpush1.bf16.xpose.msra.mxu0 0
      %579 = vmatprep.subr.bf16.mxu0 0
      %580 = vmatpush1.bf16.xpose.msra.mxu0 0
      %581 = vmatprep.subr.bf16.mxu0 0
      %582 = vmatpush1.bf16.xpose.msra.mxu0 0
      %583 = vmatprep.subr.bf16.mxu0 0
      %584 = vmatpush1.bf16.xpose.msra.mxu0 0
      %585 = vmatprep.subr.bf16.mxu0 0
      %586 = vmatpush1.bf16.xpose.msra.mxu0 0
      %587 = vmatprep.subr.bf16.mxu0 0
      %588 = vmatpush1.bf16.xpose.msra.mxu0 0
      %589 = vmatprep.subr.bf16.mxu0 0
      %590 = vmatpush1.bf16.xpose.msra.mxu0 0
      %591 = vmatprep.mubr.bf16.mxu0 0
      %592 = vmatmul.mubr.bf16.gmra.mrb[0].mxu0 %v554
      %v593 = vpop.f32.mrb[0].mxu0
      %v594 = vadd.f32 0.0, %v593
      %v595 = vpop.f32.mrb[0].mxu0
      %v596 = vpop.f32.mrb[0].mxu0
      %v597 = vpop.f32.mrb[0].mxu0
      %598 = vdwg.mxu0
      %v599 = vmul.f32 %v594, 0.35355338
      %v600 = vadd.f32 %v599, %v350
      %v601 = vsel %vm298, %v600, -inf
      %602 = vmax.xlane.f32.xlu0 %v601
      %v603 = vpop.xlane.xlu0 %602
      %v604 = vsub.f32 %v600, %v603
      %v605 = vmul.f32 %v604, 1.442695
      %v606 = vpow.pop %v605
      %v607 = vsel %vm298, %v606, 0.0
      %608 = vadd.xlane.f32.xlu0 %v607
      %v609 = vpop.xlane.xlu0 %608
      %v610 = vrcp.pop %v609
      %v611 = vmul.f32 %v606, %v610
      %v612 = vpack.c.bf16 %v611, %v611
      %613 = vrot.lane.b32.xlu0 %v550, 48
      %v614 = vpop.permute.xlu0 %613
      %v616 = vsel %vm298, %v612, 0
      %v619 = vsel %vm370, %v614, 0
      %621 = vmatprep.subr.bf16.mxu0 0
      %622 = vmatpush1.bf16.msra.mxu0 %v619
      %623 = vmatprep.subr.bf16.mxu0 0
      %624 = vmatpush1.bf16.msra.mxu0 0
      %625 = vmatprep.subr.bf16.mxu0 0
      %626 = vmatpush1.bf16.msra.mxu0 0
      %627 = vmatprep.subr.bf16.mxu0 0
      %628 = vmatpush1.bf16.msra.mxu0 0
      %629 = vmatprep.subr.bf16.mxu0 0
      %630 = vmatpush1.bf16.msra.mxu0 0
      %631 = vmatprep.subr.bf16.mxu0 0
      %632 = vmatpush1.bf16.msra.mxu0 0
      %633 = vmatprep.subr.bf16.mxu0 0
      %634 = vmatpush1.bf16.msra.mxu0 0
      %635 = vmatprep.subr.bf16.mxu0 0
      %636 = vmatpush1.bf16.msra.mxu0 0
      %637 = vmatprep.subr.bf16.mxu0 0
      %638 = vmatpush1.bf16.msra.mxu0 0
      %639 = vmatprep.subr.bf16.mxu0 0
      %640 = vmatpush1.bf16.msra.mxu0 0
      %641 = vmatprep.subr.bf16.mxu0 0
      %642 = vmatpush1.bf16.msra.mxu0 0
      %643 = vmatprep.subr.bf16.mxu0 0
      %644 = vmatpush1.bf16.msra.mxu0 0
      %645 = vmatprep.subr.bf16.mxu0 0
      %646 = vmatpush1.bf16.msra.mxu0 0
      %647 = vmatprep.subr.bf16.mxu0 0
      %648 = vmatpush1.bf16.msra.mxu0 0
      %649 = vmatprep.subr.bf16.mxu0 0
      %650 = vmatpush1.bf16.msra.mxu0 0
      %651 = vmatprep.subr.bf16.mxu0 0
      %652 = vmatpush1.bf16.msra.mxu0 0
      %653 = vmatprep.mubr.bf16.mxu0 0
      %654 = vmatmul.mubr.bf16.gmra.mrb[0].mxu0 %v616
      %v655 = vpop.f32.mrb[0].mxu0
      %v656 = vadd.f32 0.0, %v655
      %v657 = vpop.f32.mrb[0].mxu0
      %v658 = vpop.f32.mrb[0].mxu0
      %v659 = vpop.f32.mrb[0].mxu0
      %660 = vdwg.mxu0
      %v661 = vpack.c.bf16 %v656, %v656
      %v663 = vunpack.c.l.b16 %v661
      %v664 = vpack.c.b16 %v663, %v663
      %665 = vrot.lane.b32.xlu0 %v664, 16
      %v666 = vpop.permute.xlu0 %665
      %vm668 = vcmask 191616
      %669 = vst.msk [vmem:[#allocation2] sm:$0xf] %vm668, %v666
      %v670 = vld [vmem:[%s264] sm:$0xf]
      %671 = vrot.lane.b32.xlu0 %v420, 104
      %v672 = vpop.permute.xlu0 %671
      %v674 = vunpack.c.l.b16 %v670
      %v675 = vpack.c.b16 %v674, %v674
      %676 = vrot.lane.b32.xlu0 %v675, 72
      %v677 = vpop.permute.xlu0 %676
      %v679 = vsel %vm298, %v672, 0
      %v682 = vsel %vm298, %v677, 0
      %684 = vmatprep.subr.bf16.mxu0 0
      %685 = vmatpush1.bf16.xpose.msra.mxu0 %v682
      %686 = vmatprep.subr.bf16.mxu0 0
      %687 = vmatpush1.bf16.xpose.msra.mxu0 0
      %688 = vmatprep.subr.bf16.mxu0 0
      %689 = vmatpush1.bf16.xpose.msra.mxu0 0
      %690 = vmatprep.subr.bf16.mxu0 0
      %691 = vmatpush1.bf16.xpose.msra.mxu0 0
      %692 = vmatprep.subr.bf16.mxu0 0
      %693 = vmatpush1.bf16.xpose.msra.mxu0 0
      %694 = vmatprep.subr.bf16.mxu0 0
      %695 = vmatpush1.bf16.xpose.msra.mxu0 0
      %696 = vmatprep.subr.bf16.mxu0 0
      %697 = vmatpush1.bf16.xpose.msra.mxu0 0
      %698 = vmatprep.subr.bf16.mxu0 0
      %699 = vmatpush1.bf16.xpose.msra.mxu0 0
      %700 = vmatprep.subr.bf16.mxu0 0
      %701 = vmatpush1.bf16.xpose.msra.mxu0 0
      %702 = vmatprep.subr.bf16.mxu0 0
      %703 = vmatpush1.bf16.xpose.msra.mxu0 0
      %704 = vmatprep.subr.bf16.mxu0 0
      %705 = vmatpush1.bf16.xpose.msra.mxu0 0
      %706 = vmatprep.subr.bf16.mxu0 0
      %707 = vmatpush1.bf16.xpose.msra.mxu0 0
      %708 = vmatprep.subr.bf16.mxu0 0
      %709 = vmatpush1.bf16.xpose.msra.mxu0 0
      %710 = vmatprep.subr.bf16.mxu0 0
      %711 = vmatpush1.bf16.xpose.msra.mxu0 0
      %712 = vmatprep.subr.bf16.mxu0 0
      %713 = vmatpush1.bf16.xpose.msra.mxu0 0
      %714 = vmatprep.subr.bf16.mxu0 0
      %715 = vmatpush1.bf16.xpose.msra.mxu0 0
      %716 = vmatprep.mubr.bf16.mxu0 0
      %717 = vmatmul.mubr.bf16.gmra.mrb[0].mxu0 %v679
      %v718 = vpop.f32.mrb[0].mxu0
      %v719 = vadd.f32 0.0, %v718
      %v720 = vpop.f32.mrb[0].mxu0
      %v721 = vpop.f32.mrb[0].mxu0
      %v722 = vpop.f32.mrb[0].mxu0
      %723 = vdwg.mxu0
      %v724 = vmul.f32 %v719, 0.35355338
      %v725 = vadd.f32 %v724, %v350
      %v726 = vsel %vm298, %v725, -inf
      %727 = vmax.xlane.f32.xlu0 %v726
      %v728 = vpop.xlane.xlu0 %727
      %v729 = vsub.f32 %v725, %v728
      %v730 = vmul.f32 %v729, 1.442695
      %v731 = vpow.pop %v730
      %v732 = vsel %vm298, %v731, 0.0
      %733 = vadd.xlane.f32.xlu0 %v732
      %v734 = vpop.xlane.xlu0 %733
      %v735 = vrcp.pop %v734
      %v736 = vmul.f32 %v731, %v735
      %v737 = vpack.c.bf16 %v736, %v736
      %738 = vrot.lane.b32.xlu0 %v675, 40
      %v739 = vpop.permute.xlu0 %738
      %v741 = vsel %vm298, %v737, 0
      %v744 = vsel %vm370, %v739, 0
      %746 = vmatprep.subr.bf16.mxu0 0
      %747 = vmatpush1.bf16.msra.mxu0 %v744
      %748 = vmatprep.subr.bf16.mxu0 0
      %749 = vmatpush1.bf16.msra.mxu0 0
      %750 = vmatprep.subr.bf16.mxu0 0
      %751 = vmatpush1.bf16.msra.mxu0 0
      %752 = vmatprep.subr.bf16.mxu0 0
      %753 = vmatpush1.bf16.msra.mxu0 0
      %754 = vmatprep.subr.bf16.mxu0 0
      %755 = vmatpush1.bf16.msra.mxu0 0
      %756 = vmatprep.subr.bf16.mxu0 0
      %757 = vmatpush1.bf16.msra.mxu0 0
      %758 = vmatprep.subr.bf16.mxu0 0
      %759 = vmatpush1.bf16.msra.mxu0 0
      %760 = vmatprep.subr.bf16.mxu0 0
      %761 = vmatpush1.bf16.msra.mxu0 0
      %762 = vmatprep.subr.bf16.mxu0 0
      %763 = vmatpush1.bf16.msra.mxu0 0
      %764 = vmatprep.subr.bf16.mxu0 0
      %765 = vmatpush1.bf16.msra.mxu0 0
      %766 = vmatprep.subr.bf16.mxu0 0
      %767 = vmatpush1.bf16.msra.mxu0 0
      %768 = vmatprep.subr.bf16.mxu0 0
      %769 = vmatpush1.bf16.msra.mxu0 0
      %770 = vmatprep.subr.bf16.mxu0 0
      %771 = vmatpush1.bf16.msra.mxu0 0
      %772 = vmatprep.subr.bf16.mxu0 0
      %773 = vmatpush1.bf16.msra.mxu0 0
      %774 = vmatprep.subr.bf16.mxu0 0
      %775 = vmatpush1.bf16.msra.mxu0 0
      %776 = vmatprep.subr.bf16.mxu0 0
      %777 = vmatpush1.bf16.msra.mxu0 0
      %778 = vmatprep.mubr.bf16.mxu0 0
      %779 = vmatmul.mubr.bf16.gmra.mrb[0].mxu0 %v741
      %v780 = vpop.f32.mrb[0].mxu0
      %v781 = vadd.f32 0.0, %v780
      %v782 = vpop.f32.mrb[0].mxu0
      %v783 = vpop.f32.mrb[0].mxu0
      %v784 = vpop.f32.mrb[0].mxu0
      %785 = vdwg.mxu0
      %v786 = vpack.c.bf16 %v781, %v781
      %v788 = vunpack.c.l.b16 %v786
      %v789 = vpack.c.b16 %v788, %v788
      %790 = vrot.lane.b32.xlu0 %v789, 24
      %v791 = vpop.permute.xlu0 %790
      %vm793 = vcmask 257216
      %794 = vst.msk [vmem:[#allocation2] sm:$0xf] %vm793, %v791
      %v795 = vld [vmem:[#allocation2] sm:$0xf]
      %v796 = vld [vmem:[%s2] sm:$0xf]
      %v797 = vld [vmem:[%s2 + $0x4] sm:$0xf]
      %v798 = vld [vmem:[%s2 + $0x8] sm:$0xf]
      %v799 = vld [vmem:[%s2 + $0xc] sm:$0xf]
      %v800 = vld [vmem:[%s3] sm:$0x1]
      %v802 = vlaneseq
      %v803 = vshrl.u32 %v802, 7
      %v804 = vsub.s32 0, %v803
      %v805 = vrot.slane %v800, %v804
      %v811 = vunpack.c.l.b16 %v796
      %v812 = vunpack.c.l.b16 %v797
      %v813 = vunpack.c.l.b16 %v798
      %v814 = vunpack.c.l.b16 %v799
      %v815 = vpack.c.b16 %v812, %v811
      %v816 = vpack.c.b16 %v814, %v813
      %vm819 = vcmask 261120
      %v821 = vsel %vm819, %v795, 0
      %823 = vmatprep.subr.bf16.mxu0 0
      %824 = vmatpush1.bf16.msra.mxu0 %v815
      %825 = vmatprep.subr.bf16.mxu0 0
      %826 = vmatpush1.bf16.msra.mxu0 %v816
      %827 = vmatprep.subr.bf16.mxu0 0
      %828 = vmatpush1.bf16.msra.mxu0 0
      %829 = vmatprep.subr.bf16.mxu0 0
      %830 = vmatpush1.bf16.msra.mxu0 0
      %831 = vmatprep.subr.bf16.mxu0 0
      %832 = vmatpush1.bf16.msra.mxu0 0
      %833 = vmatprep.subr.bf16.mxu0 0
      %834 = vmatpush1.bf16.msra.mxu0 0
      %835 = vmatprep.subr.bf16.mxu0 0
      %836 = vmatpush1.bf16.msra.mxu0 0
      %837 = vmatprep.subr.bf16.mxu0 0
      %838 = vmatpush1.bf16.msra.mxu0 0
      %839 = vmatprep.subr.bf16.mxu0 0
      %840 = vmatpush1.bf16.msra.mxu0 0
      %841 = vmatprep.subr.bf16.mxu0 0
      %842 = vmatpush1.bf16.msra.mxu0 0
      %843 = vmatprep.subr.bf16.mxu0 0
      %844 = vmatpush1.bf16.msra.mxu0 0
      %845 = vmatprep.subr.bf16.mxu0 0
      %846 = vmatpush1.bf16.msra.mxu0 0
      %847 = vmatprep.subr.bf16.mxu0 0
      %848 = vmatpush1.bf16.msra.mxu0 0
      %849 = vmatprep.subr.bf16.mxu0 0
      %850 = vmatpush1.bf16.msra.mxu0 0
      %851 = vmatprep.subr.bf16.mxu0 0
      %852 = vmatpush1.bf16.msra.mxu0 0
      %853 = vmatprep.subr.bf16.mxu0 0
      %854 = vmatpush1.bf16.msra.mxu0 0
      %855 = vmatprep.mubr.bf16.mxu0 0
      %856 = vmatmul.mubr.bf16.gmra.mrb[0].mxu0 %v821
      %v857 = vpop.f32.mrb[0].mxu0
      %v858 = vadd.f32 %v805, %v857
      %v859 = vpop.f32.mrb[0].mxu0
      %v860 = vpop.f32.mrb[0].mxu0
      %v861 = vpop.f32.mrb[0].mxu0
      %862 = vdwg.mxu0
      %v863 = vld [vmem:[%s274] sm:$0xff]
      %v864 = vadd.f32 %v863, %v858
      %865 = vst.msk [vmem:[%s281] sm:$0xff] %vm819, %v864
      %p866 = scmp.lt.s32.totalorder %s20, 1
      %s867 = scalar_select %p866, %s20, 1
      %p868 = scmp.lt.s32.totalorder %s21, 0
      %s869 = scalar_select %p868, %s21, 0
      %s870 = sadd.s32 %s869, %s867
      %s871 = smul.addr %s870, 8
      %s872 = scalar_lea.vmem %s5, %s871
      // Predicated region
      $region41: #{encoder_forward.8} parent=39 // pred_check
        %p873 = pneg %p170
      $region42: #{encoder_forward.8} parent=39 // pred_check_branch
        %875 = sbr.rel (%p873) target = $region44
      $region43: #{encoder_forward.8} parent=39 // pred_region
        _
      $region44: #{encoder_forward.8} parent=39 // pred_fallthru
        _
    $region40: #{encoder_forward.8} parent=5 // pred_fallthru
      _
    %p876 = scmp.le.s32.totalorder 2, %s11
    // Predicated region
    $region45: #{encoder_forward.8} parent=5 // pred_check
      %p877 = pneg %p876
    $region46: #{encoder_forward.8} parent=5 // pred_check_branch
      %879 = sbr.rel (%p877) target = $region48
    $region47: #{encoder_forward.8} parent=5 // pred_region
      %s880 = ssub.s32 %s11, 2
      // Predicated region
      $region49: #{encoder_forward.8} parent=47 // pred_check
        %p881 = pneg %p176
      $region50: #{encoder_forward.8} parent=47 // pred_check_branch
        %883 = sbr.rel (%p881) target = $region52
      $region51: #{encoder_forward.8} parent=47 // pred_region
        %p884 = scmp.lt.s32.totalorder %s22, 1
        %s885 = scalar_select %p884, %s22, 1
        %p886 = scmp.lt.s32.totalorder %s23, 0
        %s887 = scalar_select %p886, %s23, 0
        %s888 = sadd.s32 %s887, %s885
        %s889 = smul.addr %s888, 8
        %s890 = scalar_lea.vmem %s5, %s889
      $region52: #{encoder_forward.8} parent=47 // pred_fallthru
        _
    $region48: #{encoder_forward.8} parent=5 // pred_fallthru
      _
  $region6: #{encoder_forward.8} parent=0 // loop_footer
    %s15 = sadd.s32 1, %s11
  $region7: #{encoder_forward.8} parent=0 // loop_footer_branch
    %10 = sbr.rel target = $region3
  $region8: #{encoder_forward.8} parent=0 // loop_exit
    _

</llo_original>
